<compile_context>
chip_gen: v5e
topology: v5e:2x2
jax: 0.10.0
libtpu: 0.0.40
codegen_flags: <defaults>
</compile_context>

<pallas_src>
import numpy as np

import jax
import jax.numpy as jnp
from jax.experimental import pallas as pl
from jax.experimental.pallas import tpu as pltpu

# ------------------------------- dimensions ----------------------------------
IN_DIM = 16                     # in_dim
MEM_DIM = 32                    # mem_dim
GATE_DIM = 4 * MEM_DIM          # fused [i | o | u | f] -> 128 lanes (one full vreg)
MAXC = 4                        # max children per node (missing -> zero one-hot)
N_MAX = 8                       # state slots reserved per tree
NODES_PER_LEVEL = 8             # nodes processed together per level (sublane batch)
MAX_LEVELS = 4                  # max tree depth supported (padded levels are no-ops)

f32 = jnp.float32


# --------------------------------- kernel ------------------------------------
def _forest_kernel(gn_ref, gk_ref, sc_ref, sm_ref,        # one-hot schedule tables
                   x_ref, wx_ref, wh_ref, b_ref,          # embeddings + fused weights
                   out_ref):                              # fused [c | h] state table
    n_levels, npl, n_state = gn_ref.shape
    maxc = gk_ref.shape[1] // npl
    mem = wh_ref.shape[0]

    x_all = x_ref[...]                        # (n_state, IN_DIM)
    w_x = wx_ref[...]                         # (IN_DIM, 4*mem)  [i|o|u|f]
    w_h = wh_ref[...]                         # (mem,    4*mem)  [i|o|u|f]
    b = b_ref[...]                            # (1,      4*mem)
    wh_iou = w_h[:, :3 * mem]                 # (mem, 3*mem)
    wh_f = w_h[:, 3 * mem:]                   # (mem, mem)

    # Fused lane-dense state [c | h], carried as a value across levels.
    state = jnp.zeros((n_state, 2 * mem), f32)

    for lvl in range(n_levels):               # short static loop -> fully unrolled
        gn = gn_ref[lvl]                      # (npl, n_state)       node gather one-hot
        gk = gk_ref[lvl]                      # (maxc*npl, n_state)  child gather one-hot
        sc = sc_ref[lvl]                      # (n_state, npl)       scatter one-hot
        sm = sm_ref[lvl]                      # (n_state, 1)         rows written this level

        # ---- MXU one-hot gathers (no scalar-addressed row copies) ----
        x_lvl = jnp.dot(gn, x_all, preferred_element_type=f32)        # (npl, IN_DIM)
        kid = jnp.dot(gk, state, preferred_element_type=f32)          # (maxc*npl, 2*mem)
        kid_c = kid[:, :mem]
        kid_h = kid[:, mem:]

        # child_h_sum on the VPU (maxc-1 adds), not per-child 128-lane matmuls
        h_sum = jnp.zeros((npl, mem), f32)
        for k in range(maxc):
            h_sum = h_sum + kid_h[k * npl:(k + 1) * npl, :]

        gates_x = jnp.dot(x_lvl, w_x, preferred_element_type=f32) + b          # (npl, 128)
        iou = gates_x[:, :3 * mem] + jnp.dot(h_sum, wh_iou,
                                             preferred_element_type=f32)       # (npl, 96)
        fx = gates_x[:, 3 * mem:]                                               # (npl, mem)

        # per-child forget path: one 32-col matmul for every child of the level
        fh = jnp.dot(kid_h, wh_f, preferred_element_type=f32)                  # (maxc*npl, mem)
        fc_sum = jnp.zeros((npl, mem), f32)
        for k in range(maxc):
            f_k = jax.nn.sigmoid(fh[k * npl:(k + 1) * npl, :] + fx)
            fc_sum = fc_sum + f_k * kid_c[k * npl:(k + 1) * npl, :]   # missing kids -> 0

        i_g = jax.nn.sigmoid(iou[:, :mem])
        o_g = jax.nn.sigmoid(iou[:, mem:2 * mem])
        u_g = jnp.tanh(iou[:, 2 * mem:])
        c_new = i_g * u_g + fc_sum
        h_new = o_g * jnp.tanh(c_new)
        new_ch = jnp.concatenate([c_new, h_new], axis=1)                        # (npl, 2*mem)

        # ---- MXU one-hot scatter + masked blend (inactive slots untouched) ----
        scattered = jnp.dot(sc, new_ch, preferred_element_type=f32)             # (n_state, 2*mem)
        state = jnp.where(sm > 0.0, scattered, state)

    out_ref[...] = state                      # single lane-dense output write


@jax.jit
def tree_lstm_forest(gath_nodes, gath_kids, scat_nodes, scat_mask, x_pad, w_x, w_h, b):
    """Run the ChildSum TreeLSTM over a whole forest in one kernel invocation.

    Returns (c_all, h_all), each (n_state, MEM_DIM)."""
    n_state = x_pad.shape[0]
    vmem = lambda: pl.BlockSpec(memory_space=pltpu.MemorySpace.VMEM)
    out = pl.pallas_call(
        _forest_kernel,
        out_shape=jax.ShapeDtypeStruct((n_state, 2 * MEM_DIM), f32),
        in_specs=[vmem() for _ in range(8)],
        out_specs=vmem(),
    )(gath_nodes, gath_kids, scat_nodes, scat_mask, x_pad, w_x, w_h, b)
    return out[:, :MEM_DIM], out[:, MEM_DIM:]


# ----------------------------- host-side glue ---------------------------------
class Tree:
    def __init__(self, idx, children=()):
        self.idx = idx
        self.children = list(children)


def build_schedule(trees, n_max, max_levels, npl, maxc):
    """Flatten the data-dependent tree recursion into static one-hot selection
    tables consumed by the kernel.  One-time O(nodes * n_state) numpy work."""
    B = len(trees)
    n_state = B * n_max
    gath_nodes = np.zeros((max_levels, npl, n_state), np.float32)
    gath_kids = np.zeros((max_levels, maxc * npl, n_state), np.float32)
    scat_nodes = np.zeros((max_levels, n_state, npl), np.float32)
    scat_mask = np.zeros((max_levels, n_state, 1), np.float32)
    fill = [0] * max_levels
    meta = []

    for b, tree in enumerate(trees):
        off = b * n_max
        postorder = []

        def visit(node):
            child_lvls = [visit(ch) for ch in node.children]
            lvl = (max(child_lvls) + 1) if child_lvls else 0
            assert lvl < max_levels, "tree deeper than MAX_LEVELS"
            assert len(node.children) <= maxc, "too many children for MAXC"
            j = fill[lvl]
            assert j < npl, "too many nodes in one level"
            fill[lvl] += 1
            slot = off + node.idx
            gath_nodes[lvl, j, slot] = 1.0
            scat_nodes[lvl, slot, j] = 1.0
            scat_mask[lvl, slot, 0] = 1.0
            for k, ch in enumerate(node.children):
                gath_kids[lvl, k * npl + j, off + ch.idx] = 1.0
            postorder.append(slot)
            return lvl

        visit(tree)
        meta.append((off + tree.idx, postorder))

    # every state slot is written at most once across all levels
    assert scat_mask.sum(axis=(0, 2)).max() <= 1.0
    return gath_nodes, gath_kids, scat_nodes, scat_mask, meta


# --------------------------- pure-JAX reference --------------------------------
def ref_tree_lstm(tree, x, w_x, w_h, b):
    """Faithful port of ChildSumTreeLSTM.node_forward / forward (fused weights)."""
    hp = jax.lax.Precision.HIGHEST
    H = []

    def rec(node):
        states = [rec(ch) for ch in node.children]
        if states:
            child_c = jnp.concatenate([s[0] for s in states], axis=0)
            child_h = jnp.concatenate([s[1] for s in states], axis=0)
        else:
            child_c = jnp.zeros((1, MEM_DIM), f32)
            child_h = jnp.zeros((1, MEM_DIM), f32)
        xi = x[node.idx][None, :]
        xw = jnp.dot(xi, w_x, precision=hp) + b
        hsum = jnp.sum(child_h, axis=0, keepdims=True)
        iou = xw[:, :3 * MEM_DIM] + jnp.dot(hsum, w_h[:, :3 * MEM_DIM], precision=hp)
        i = jax.nn.sigmoid(iou[:, :MEM_DIM])
        o = jax.nn.sigmoid(iou[:, MEM_DIM:2 * MEM_DIM])
        u = jnp.tanh(iou[:, 2 * MEM_DIM:])
        f = jax.nn.sigmoid(jnp.dot(child_h, w_h[:, 3 * MEM_DIM:], precision=hp)
                           + xw[:, 3 * MEM_DIM:])
        c = i * u + jnp.sum(f * child_c, axis=0, keepdims=True)
        h = o * jnp.tanh(c)
        H.append(h)
        return c, h

    c, h = rec(tree)
    return c, h, jnp.concatenate(H, axis=0)


# ----------------------------------- main --------------------------------------
if __name__ == "__main__":
    key = jax.random.PRNGKey(0)
    k_wx, k_wh, k_b, k_l, k_r = jax.random.split(key, 5)

    # Fused parameters, PyTorch Linear semantics pre-transposed to (in, out):
    #   w_x = [ioux^T | fx^T]               (IN_DIM, 128)
    #   w_h = [iouh^T | fh^T]               (MEM_DIM, 128)
    #   b   = [b_ioux+b_iouh | b_fx+b_fh]   (1, 128)
    w_x = 0.1 * jax.random.normal(k_wx, (IN_DIM, GATE_DIM), f32)
    w_h = 0.1 * jax.random.normal(k_wh, (MEM_DIM, GATE_DIM), f32)
    b = 0.1 * jax.random.normal(k_b, (1, GATE_DIM), f32)

    # Two example sentences (pre-embedded inputs) + dependency trees.
    l_x = jax.random.normal(k_l, (6, IN_DIM), f32)
    r_x = jax.random.normal(k_r, (5, IN_DIM), f32)
    ltree = Tree(5, [Tree(2, [Tree(0), Tree(1)]), Tree(4, [Tree(3)])])
    rtree = Tree(4, [Tree(1, [Tree(0)]), Tree(3, [Tree(2)])])

    trees = [ltree, rtree]
    xs = [l_x, r_x]
    B = len(trees)
    gn_np, gk_np, sc_np, sm_np, meta = build_schedule(
        trees, N_MAX, MAX_LEVELS, NODES_PER_LEVEL, MAXC)
    n_state = B * N_MAX

    x_pad = jnp.zeros((n_state, IN_DIM), f32)
    for bi, xb in enumerate(xs):
        x_pad = x_pad.at[bi * N_MAX: bi * N_MAX + xb.shape[0]].set(xb)

    c_all, h_all = tree_lstm_forest(jnp.asarray(gn_np), jnp.asarray(gk_np),
                                    jnp.asarray(sc_np), jnp.asarray(sm_np),
                                    x_pad, w_x, w_h, b)
    jax.block_until_ready((c_all, h_all))

    # Extract per-tree outputs like the PyTorch module: root (c, h) and post-order H.
    ok = True
    for tree, xb, (root_slot, postorder) in zip(trees, xs, meta):
        c_root = c_all[root_slot][None, :]
        h_root = h_all[root_slot][None, :]
        H = h_all[jnp.asarray(postorder, dtype=jnp.int32)]

        c_ref, h_ref, H_ref = ref_tree_lstm(tree, xb, w_x, w_h, b)
        ok &= bool(jnp.allclose(c_root, c_ref, atol=2e-3, rtol=2e-3))
        ok &= bool(jnp.allclose(h_root, h_ref, atol=2e-3, rtol=2e-3))
        ok &= bool(jnp.allclose(H, H_ref, atol=2e-3, rtol=2e-3))
        assert c_root.shape == (1, MEM_DIM) and h_root.shape == (1, MEM_DIM)
        assert H.shape == (len(postorder), MEM_DIM)

    assert ok, "Pallas TreeLSTM does not match the pure-JAX reference"
    print("KERNEL_OK")
</pallas_src>

<mosaic_0001>
module attributes {stable_mosaic.version = 11 : i64} {
  func.func @_forest_kernel(%arg0: memref<4x8x16xf32, #tpu.memory_space<vmem>>, %arg1: memref<4x32x16xf32, #tpu.memory_space<vmem>>, %arg2: memref<4x16x8xf32, #tpu.memory_space<vmem>>, %arg3: memref<4x16x1xf32, #tpu.memory_space<vmem>>, %arg4: memref<16x16xf32, #tpu.memory_space<vmem>>, %arg5: memref<16x128xf32, #tpu.memory_space<vmem>>, %arg6: memref<32x128xf32, #tpu.memory_space<vmem>>, %arg7: memref<1x128xf32, #tpu.memory_space<vmem>>, %arg8: memref<16x64xf32, #tpu.memory_space<vmem>>) attributes {dimension_semantics = [], scalar_prefetch = 0 : i64, scratch_operands = 0 : i64, tpu.core_type = #tpu.core_type<tc>} {
    %c0 = arith.constant 0 : index
    %c0_0 = arith.constant 0 : index
    %0 = vector.load %arg4[%c0, %c0_0] : memref<16x16xf32, #tpu.memory_space<vmem>>, vector<16x16xf32>
    %c0_1 = arith.constant 0 : index
    %c0_2 = arith.constant 0 : index
    %1 = vector.load %arg5[%c0_1, %c0_2] : memref<16x128xf32, #tpu.memory_space<vmem>>, vector<16x128xf32>
    %c0_3 = arith.constant 0 : index
    %c0_4 = arith.constant 0 : index
    %2 = vector.load %arg6[%c0_3, %c0_4] : memref<32x128xf32, #tpu.memory_space<vmem>>, vector<32x128xf32>
    %c0_5 = arith.constant 0 : index
    %c0_6 = arith.constant 0 : index
    %3 = vector.load %arg7[%c0_5, %c0_6] : memref<1x128xf32, #tpu.memory_space<vmem>>, vector<1x128xf32>
    %4 = vector.extract_strided_slice %2 {offsets = [0, 0], sizes = [32, 96], strides = [1, 1]} : vector<32x128xf32> to vector<32x96xf32>
    %5 = vector.extract_strided_slice %2 {offsets = [0, 96], sizes = [32, 32], strides = [1, 1]} : vector<32x128xf32> to vector<32x32xf32>
    %cst = arith.constant 0.000000e+00 : f32
    %6 = vector.broadcast %cst : f32 to vector<16x64xf32>
    %c0_7 = arith.constant 0 : index
    %c0_8 = arith.constant 0 : index
    %c0_9 = arith.constant 0 : index
    %7 = vector.load %arg0[%c0_7, %c0_8, %c0_9] : memref<4x8x16xf32, #tpu.memory_space<vmem>>, vector<1x8x16xf32>
    %8 = vector.shape_cast %7 : vector<1x8x16xf32> to vector<8x16xf32>
    %c0_10 = arith.constant 0 : index
    %c0_11 = arith.constant 0 : index
    %c0_12 = arith.constant 0 : index
    %9 = vector.load %arg1[%c0_10, %c0_11, %c0_12] : memref<4x32x16xf32, #tpu.memory_space<vmem>>, vector<1x32x16xf32>
    %10 = vector.shape_cast %9 : vector<1x32x16xf32> to vector<32x16xf32>
    %c0_13 = arith.constant 0 : index
    %c0_14 = arith.constant 0 : index
    %c0_15 = arith.constant 0 : index
    %11 = vector.load %arg2[%c0_13, %c0_14, %c0_15] : memref<4x16x8xf32, #tpu.memory_space<vmem>>, vector<1x16x8xf32>
    %12 = vector.shape_cast %11 : vector<1x16x8xf32> to vector<16x8xf32>
    %c0_16 = arith.constant 0 : index
    %c0_17 = arith.constant 0 : index
    %c0_18 = arith.constant 0 : index
    %13 = vector.load %arg3[%c0_16, %c0_17, %c0_18] : memref<4x16x1xf32, #tpu.memory_space<vmem>>, vector<1x16x1xf32>
    %14 = vector.shape_cast %13 : vector<1x16x1xf32> to vector<16x1xf32>
    %cst_19 = arith.constant dense<0.000000e+00> : vector<8x16xf32>
    %15 = tpu.matmul %8, %0, %cst_19 {dimension_numbers = #tpu.dot_dimension_numbers<[1], [0], [0], [1], [0, 0, 1, 1], [], []>} : vector<8x16xf32>, vector<16x16xf32>, vector<8x16xf32> -> vector<8x16xf32>
    %cst_20 = arith.constant dense<0.000000e+00> : vector<32x64xf32>
    %16 = tpu.matmul %10, %6, %cst_20 {dimension_numbers = #tpu.dot_dimension_numbers<[1], [0], [0], [1], [0, 0, 1, 1], [], []>} : vector<32x16xf32>, vector<16x64xf32>, vector<32x64xf32> -> vector<32x64xf32>
    %17 = vector.extract_strided_slice %16 {offsets = [0, 0], sizes = [32, 32], strides = [1, 1]} : vector<32x64xf32> to vector<32x32xf32>
    %18 = vector.extract_strided_slice %16 {offsets = [0, 32], sizes = [32, 32], strides = [1, 1]} : vector<32x64xf32> to vector<32x32xf32>
    %cst_21 = arith.constant 0.000000e+00 : f32
    %19 = vector.broadcast %cst_21 : f32 to vector<8x32xf32>
    %20 = vector.extract_strided_slice %18 {offsets = [0, 0], sizes = [8, 32], strides = [1, 1]} : vector<32x32xf32> to vector<8x32xf32>
    %21 = arith.addf %19, %20 : vector<8x32xf32>
    %22 = vector.extract_strided_slice %18 {offsets = [8, 0], sizes = [8, 32], strides = [1, 1]} : vector<32x32xf32> to vector<8x32xf32>
    %23 = arith.addf %21, %22 : vector<8x32xf32>
    %24 = vector.extract_strided_slice %18 {offsets = [16, 0], sizes = [8, 32], strides = [1, 1]} : vector<32x32xf32> to vector<8x32xf32>
    %25 = arith.addf %23, %24 : vector<8x32xf32>
    %26 = vector.extract_strided_slice %18 {offsets = [24, 0], sizes = [8, 32], strides = [1, 1]} : vector<32x32xf32> to vector<8x32xf32>
    %27 = arith.addf %25, %26 : vector<8x32xf32>
    %cst_22 = arith.constant dense<0.000000e+00> : vector<8x128xf32>
    %28 = tpu.matmul %15, %1, %cst_22 {dimension_numbers = #tpu.dot_dimension_numbers<[1], [0], [0], [1], [0, 0, 1, 1], [], []>} : vector<8x16xf32>, vector<16x128xf32>, vector<8x128xf32> -> vector<8x128xf32>
    %29 = vector.broadcast %3 : vector<1x128xf32> to vector<8x128xf32>
    %30 = arith.addf %28, %29 : vector<8x128xf32>
    %31 = vector.extract_strided_slice %30 {offsets = [0, 0], sizes = [8, 96], strides = [1, 1]} : vector<8x128xf32> to vector<8x96xf32>
    %cst_23 = arith.constant dense<0.000000e+00> : vector<8x96xf32>
    %32 = tpu.matmul %27, %4, %cst_23 {dimension_numbers = #tpu.dot_dimension_numbers<[1], [0], [0], [1], [0, 0, 1, 1], [], []>} : vector<8x32xf32>, vector<32x96xf32>, vector<8x96xf32> -> vector<8x96xf32>
    %33 = arith.addf %31, %32 : vector<8x96xf32>
    %34 = vector.extract_strided_slice %30 {offsets = [0, 96], sizes = [8, 32], strides = [1, 1]} : vector<8x128xf32> to vector<8x32xf32>
    %cst_24 = arith.constant dense<0.000000e+00> : vector<32x32xf32>
    %35 = tpu.matmul %18, %5, %cst_24 {dimension_numbers = #tpu.dot_dimension_numbers<[1], [0], [0], [1], [0, 0, 1, 1], [], []>} : vector<32x32xf32>, vector<32x32xf32>, vector<32x32xf32> -> vector<32x32xf32>
    %cst_25 = arith.constant 0.000000e+00 : f32
    %36 = vector.broadcast %cst_25 : f32 to vector<8x32xf32>
    %37 = vector.extract_strided_slice %35 {offsets = [0, 0], sizes = [8, 32], strides = [1, 1]} : vector<32x32xf32> to vector<8x32xf32>
    %38 = arith.addf %37, %34 : vector<8x32xf32>
    %39 = arith.negf %38 : vector<8x32xf32>
    %40 = math.exp %39 : vector<8x32xf32>
    %cst_26 = arith.constant 1.000000e+00 : f32
    %41 = vector.broadcast %cst_26 : f32 to vector<8x32xf32>
    %42 = arith.addf %41, %40 : vector<8x32xf32>
    %43 = arith.divf %41, %42 : vector<8x32xf32>
    %44 = vector.extract_strided_slice %17 {offsets = [0, 0], sizes = [8, 32], strides = [1, 1]} : vector<32x32xf32> to vector<8x32xf32>
    %45 = arith.mulf %43, %44 : vector<8x32xf32>
    %46 = arith.addf %36, %45 : vector<8x32xf32>
    %47 = vector.extract_strided_slice %35 {offsets = [8, 0], sizes = [8, 32], strides = [1, 1]} : vector<32x32xf32> to vector<8x32xf32>
    %48 = arith.addf %47, %34 : vector<8x32xf32>
    %49 = arith.negf %48 : vector<8x32xf32>
    %50 = math.exp %49 : vector<8x32xf32>
    %cst_27 = arith.constant 1.000000e+00 : f32
    %51 = vector.broadcast %cst_27 : f32 to vector<8x32xf32>
    %52 = arith.addf %51, %50 : vector<8x32xf32>
    %53 = arith.divf %51, %52 : vector<8x32xf32>
    %54 = vector.extract_strided_slice %17 {offsets = [8, 0], sizes = [8, 32], strides = [1, 1]} : vector<32x32xf32> to vector<8x32xf32>
    %55 = arith.mulf %53, %54 : vector<8x32xf32>
    %56 = arith.addf %46, %55 : vector<8x32xf32>
    %57 = vector.extract_strided_slice %35 {offsets = [16, 0], sizes = [8, 32], strides = [1, 1]} : vector<32x32xf32> to vector<8x32xf32>
    %58 = arith.addf %57, %34 : vector<8x32xf32>
    %59 = arith.negf %58 : vector<8x32xf32>
    %60 = math.exp %59 : vector<8x32xf32>
    %cst_28 = arith.constant 1.000000e+00 : f32
    %61 = vector.broadcast %cst_28 : f32 to vector<8x32xf32>
    %62 = arith.addf %61, %60 : vector<8x32xf32>
    %63 = arith.divf %61, %62 : vector<8x32xf32>
    %64 = vector.extract_strided_slice %17 {offsets = [16, 0], sizes = [8, 32], strides = [1, 1]} : vector<32x32xf32> to vector<8x32xf32>
    %65 = arith.mulf %63, %64 : vector<8x32xf32>
    %66 = arith.addf %56, %65 : vector<8x32xf32>
    %67 = vector.extract_strided_slice %35 {offsets = [24, 0], sizes = [8, 32], strides = [1, 1]} : vector<32x32xf32> to vector<8x32xf32>
    %68 = arith.addf %67, %34 : vector<8x32xf32>
    %69 = arith.negf %68 : vector<8x32xf32>
    %70 = math.exp %69 : vector<8x32xf32>
    %cst_29 = arith.constant 1.000000e+00 : f32
    %71 = vector.broadcast %cst_29 : f32 to vector<8x32xf32>
    %72 = arith.addf %71, %70 : vector<8x32xf32>
    %73 = arith.divf %71, %72 : vector<8x32xf32>
    %74 = vector.extract_strided_slice %17 {offsets = [24, 0], sizes = [8, 32], strides = [1, 1]} : vector<32x32xf32> to vector<8x32xf32>
    %75 = arith.mulf %73, %74 : vector<8x32xf32>
    %76 = arith.addf %66, %75 : vector<8x32xf32>
    %77 = vector.extract_strided_slice %33 {offsets = [0, 0], sizes = [8, 32], strides = [1, 1]} : vector<8x96xf32> to vector<8x32xf32>
    %78 = arith.negf %77 : vector<8x32xf32>
    %79 = math.exp %78 : vector<8x32xf32>
    %cst_30 = arith.constant 1.000000e+00 : f32
    %80 = vector.broadcast %cst_30 : f32 to vector<8x32xf32>
    %81 = arith.addf %80, %79 : vector<8x32xf32>
    %82 = arith.divf %80, %81 : vector<8x32xf32>
    %83 = vector.extract_strided_slice %33 {offsets = [0, 32], sizes = [8, 32], strides = [1, 1]} : vector<8x96xf32> to vector<8x32xf32>
    %84 = arith.negf %83 : vector<8x32xf32>
    %85 = math.exp %84 : vector<8x32xf32>
    %cst_31 = arith.constant 1.000000e+00 : f32
    %86 = vector.broadcast %cst_31 : f32 to vector<8x32xf32>
    %87 = arith.addf %86, %85 : vector<8x32xf32>
    %88 = arith.divf %86, %87 : vector<8x32xf32>
    %89 = vector.extract_strided_slice %33 {offsets = [0, 64], sizes = [8, 32], strides = [1, 1]} : vector<8x96xf32> to vector<8x32xf32>
    %90 = math.tanh %89 : vector<8x32xf32>
    %91 = arith.mulf %82, %90 : vector<8x32xf32>
    %92 = arith.addf %91, %76 : vector<8x32xf32>
    %93 = math.tanh %92 : vector<8x32xf32>
    %94 = arith.mulf %88, %93 : vector<8x32xf32>
    %95 = tpu.concatenate %92, %94 in 1 : vector<8x32xf32>, vector<8x32xf32> -> vector<8x64xf32>
    %cst_32 = arith.constant dense<0.000000e+00> : vector<16x64xf32>
    %96 = tpu.matmul %12, %95, %cst_32 {dimension_numbers = #tpu.dot_dimension_numbers<[1], [0], [0], [1], [0, 0, 1, 1], [], []>} : vector<16x8xf32>, vector<8x64xf32>, vector<16x64xf32> -> vector<16x64xf32>
    %cst_33 = arith.constant 0.000000e+00 : f32
    %97 = vector.broadcast %cst_33 : f32 to vector<16x1xf32>
    %98 = arith.cmpf ogt, %14, %97 : vector<16x1xf32>
    %99 = vector.shape_cast %98 : vector<16x1xi1> to vector<16x1xi1>
    %100 = vector.broadcast %99 : vector<16x1xi1> to vector<16x64xi1>
    %101 = arith.select %100, %96, %6 : vector<16x64xi1>, vector<16x64xf32>
    %c1 = arith.constant 1 : index
    %c0_34 = arith.constant 0 : index
    %c0_35 = arith.constant 0 : index
    %102 = vector.load %arg0[%c1, %c0_34, %c0_35] : memref<4x8x16xf32, #tpu.memory_space<vmem>>, vector<1x8x16xf32>
    %103 = vector.shape_cast %102 : vector<1x8x16xf32> to vector<8x16xf32>
    %c1_36 = arith.constant 1 : index
    %c0_37 = arith.constant 0 : index
    %c0_38 = arith.constant 0 : index
    %104 = vector.load %arg1[%c1_36, %c0_37, %c0_38] : memref<4x32x16xf32, #tpu.memory_space<vmem>>, vector<1x32x16xf32>
    %105 = vector.shape_cast %104 : vector<1x32x16xf32> to vector<32x16xf32>
    %c1_39 = arith.constant 1 : index
    %c0_40 = arith.constant 0 : index
    %c0_41 = arith.constant 0 : index
    %106 = vector.load %arg2[%c1_39, %c0_40, %c0_41] : memref<4x16x8xf32, #tpu.memory_space<vmem>>, vector<1x16x8xf32>
    %107 = vector.shape_cast %106 : vector<1x16x8xf32> to vector<16x8xf32>
    %c1_42 = arith.constant 1 : index
    %c0_43 = arith.constant 0 : index
    %c0_44 = arith.constant 0 : index
    %108 = vector.load %arg3[%c1_42, %c0_43, %c0_44] : memref<4x16x1xf32, #tpu.memory_space<vmem>>, vector<1x16x1xf32>
    %109 = vector.shape_cast %108 : vector<1x16x1xf32> to vector<16x1xf32>
    %cst_45 = arith.constant dense<0.000000e+00> : vector<8x16xf32>
    %110 = tpu.matmul %103, %0, %cst_45 {dimension_numbers = #tpu.dot_dimension_numbers<[1], [0], [0], [1], [0, 0, 1, 1], [], []>} : vector<8x16xf32>, vector<16x16xf32>, vector<8x16xf32> -> vector<8x16xf32>
    %cst_46 = arith.constant dense<0.000000e+00> : vector<32x64xf32>
    %111 = tpu.matmul %105, %101, %cst_46 {dimension_numbers = #tpu.dot_dimension_numbers<[1], [0], [0], [1], [0, 0, 1, 1], [], []>} : vector<32x16xf32>, vector<16x64xf32>, vector<32x64xf32> -> vector<32x64xf32>
    %112 = vector.extract_strided_slice %111 {offsets = [0, 0], sizes = [32, 32], strides = [1, 1]} : vector<32x64xf32> to vector<32x32xf32>
    %113 = vector.extract_strided_slice %111 {offsets = [0, 32], sizes = [32, 32], strides = [1, 1]} : vector<32x64xf32> to vector<32x32xf32>
    %cst_47 = arith.constant 0.000000e+00 : f32
    %114 = vector.broadcast %cst_47 : f32 to vector<8x32xf32>
    %115 = vector.extract_strided_slice %113 {offsets = [0, 0], sizes = [8, 32], strides = [1, 1]} : vector<32x32xf32> to vector<8x32xf32>
    %116 = arith.addf %114, %115 : vector<8x32xf32>
    %117 = vector.extract_strided_slice %113 {offsets = [8, 0], sizes = [8, 32], strides = [1, 1]} : vector<32x32xf32> to vector<8x32xf32>
    %118 = arith.addf %116, %117 : vector<8x32xf32>
    %119 = vector.extract_strided_slice %113 {offsets = [16, 0], sizes = [8, 32], strides = [1, 1]} : vector<32x32xf32> to vector<8x32xf32>
    %120 = arith.addf %118, %119 : vector<8x32xf32>
    %121 = vector.extract_strided_slice %113 {offsets = [24, 0], sizes = [8, 32], strides = [1, 1]} : vector<32x32xf32> to vector<8x32xf32>
    %122 = arith.addf %120, %121 : vector<8x32xf32>
    %cst_48 = arith.constant dense<0.000000e+00> : vector<8x128xf32>
    %123 = tpu.matmul %110, %1, %cst_48 {dimension_numbers = #tpu.dot_dimension_numbers<[1], [0], [0], [1], [0, 0, 1, 1], [], []>} : vector<8x16xf32>, vector<16x128xf32>, vector<8x128xf32> -> vector<8x128xf32>
    %124 = vector.broadcast %3 : vector<1x128xf32> to vector<8x128xf32>
    %125 = arith.addf %123, %124 : vector<8x128xf32>
    %126 = vector.extract_strided_slice %125 {offsets = [0, 0], sizes = [8, 96], strides = [1, 1]} : vector<8x128xf32> to vector<8x96xf32>
    %cst_49 = arith.constant dense<0.000000e+00> : vector<8x96xf32>
    %127 = tpu.matmul %122, %4, %cst_49 {dimension_numbers = #tpu.dot_dimension_numbers<[1], [0], [0], [1], [0, 0, 1, 1], [], []>} : vector<8x32xf32>, vector<32x96xf32>, vector<8x96xf32> -> vector<8x96xf32>
    %128 = arith.addf %126, %127 : vector<8x96xf32>
    %129 = vector.extract_strided_slice %125 {offsets = [0, 96], sizes = [8, 32], strides = [1, 1]} : vector<8x128xf32> to vector<8x32xf32>
    %cst_50 = arith.constant dense<0.000000e+00> : vector<32x32xf32>
    %130 = tpu.matmul %113, %5, %cst_50 {dimension_numbers = #tpu.dot_dimension_numbers<[1], [0], [0], [1], [0, 0, 1, 1], [], []>} : vector<32x32xf32>, vector<32x32xf32>, vector<32x32xf32> -> vector<32x32xf32>
    %cst_51 = arith.constant 0.000000e+00 : f32
    %131 = vector.broadcast %cst_51 : f32 to vector<8x32xf32>
    %132 = vector.extract_strided_slice %130 {offsets = [0, 0], sizes = [8, 32], strides = [1, 1]} : vector<32x32xf32> to vector<8x32xf32>
    %133 = arith.addf %132, %129 : vector<8x32xf32>
    %134 = arith.negf %133 : vector<8x32xf32>
    %135 = math.exp %134 : vector<8x32xf32>
    %cst_52 = arith.constant 1.000000e+00 : f32
    %136 = vector.broadcast %cst_52 : f32 to vector<8x32xf32>
    %137 = arith.addf %136, %135 : vector<8x32xf32>
    %138 = arith.divf %136, %137 : vector<8x32xf32>
    %139 = vector.extract_strided_slice %112 {offsets = [0, 0], sizes = [8, 32], strides = [1, 1]} : vector<32x32xf32> to vector<8x32xf32>
    %140 = arith.mulf %138, %139 : vector<8x32xf32>
    %141 = arith.addf %131, %140 : vector<8x32xf32>
    %142 = vector.extract_strided_slice %130 {offsets = [8, 0], sizes = [8, 32], strides = [1, 1]} : vector<32x32xf32> to vector<8x32xf32>
    %143 = arith.addf %142, %129 : vector<8x32xf32>
    %144 = arith.negf %143 : vector<8x32xf32>
    %145 = math.exp %144 : vector<8x32xf32>
    %cst_53 = arith.constant 1.000000e+00 : f32
    %146 = vector.broadcast %cst_53 : f32 to vector<8x32xf32>
    %147 = arith.addf %146, %145 : vector<8x32xf32>
    %148 = arith.divf %146, %147 : vector<8x32xf32>
    %149 = vector.extract_strided_slice %112 {offsets = [8, 0], sizes = [8, 32], strides = [1, 1]} : vector<32x32xf32> to vector<8x32xf32>
    %150 = arith.mulf %148, %149 : vector<8x32xf32>
    %151 = arith.addf %141, %150 : vector<8x32xf32>
    %152 = vector.extract_strided_slice %130 {offsets = [16, 0], sizes = [8, 32], strides = [1, 1]} : vector<32x32xf32> to vector<8x32xf32>
    %153 = arith.addf %152, %129 : vector<8x32xf32>
    %154 = arith.negf %153 : vector<8x32xf32>
    %155 = math.exp %154 : vector<8x32xf32>
    %cst_54 = arith.constant 1.000000e+00 : f32
    %156 = vector.broadcast %cst_54 : f32 to vector<8x32xf32>
    %157 = arith.addf %156, %155 : vector<8x32xf32>
    %158 = arith.divf %156, %157 : vector<8x32xf32>
    %159 = vector.extract_strided_slice %112 {offsets = [16, 0], sizes = [8, 32], strides = [1, 1]} : vector<32x32xf32> to vector<8x32xf32>
    %160 = arith.mulf %158, %159 : vector<8x32xf32>
    %161 = arith.addf %151, %160 : vector<8x32xf32>
    %162 = vector.extract_strided_slice %130 {offsets = [24, 0], sizes = [8, 32], strides = [1, 1]} : vector<32x32xf32> to vector<8x32xf32>
    %163 = arith.addf %162, %129 : vector<8x32xf32>
    %164 = arith.negf %163 : vector<8x32xf32>
    %165 = math.exp %164 : vector<8x32xf32>
    %cst_55 = arith.constant 1.000000e+00 : f32
    %166 = vector.broadcast %cst_55 : f32 to vector<8x32xf32>
    %167 = arith.addf %166, %165 : vector<8x32xf32>
    %168 = arith.divf %166, %167 : vector<8x32xf32>
    %169 = vector.extract_strided_slice %112 {offsets = [24, 0], sizes = [8, 32], strides = [1, 1]} : vector<32x32xf32> to vector<8x32xf32>
    %170 = arith.mulf %168, %169 : vector<8x32xf32>
    %171 = arith.addf %161, %170 : vector<8x32xf32>
    %172 = vector.extract_strided_slice %128 {offsets = [0, 0], sizes = [8, 32], strides = [1, 1]} : vector<8x96xf32> to vector<8x32xf32>
    %173 = arith.negf %172 : vector<8x32xf32>
    %174 = math.exp %173 : vector<8x32xf32>
    %cst_56 = arith.constant 1.000000e+00 : f32
    %175 = vector.broadcast %cst_56 : f32 to vector<8x32xf32>
    %176 = arith.addf %175, %174 : vector<8x32xf32>
    %177 = arith.divf %175, %176 : vector<8x32xf32>
    %178 = vector.extract_strided_slice %128 {offsets = [0, 32], sizes = [8, 32], strides = [1, 1]} : vector<8x96xf32> to vector<8x32xf32>
    %179 = arith.negf %178 : vector<8x32xf32>
    %180 = math.exp %179 : vector<8x32xf32>
    %cst_57 = arith.constant 1.000000e+00 : f32
    %181 = vector.broadcast %cst_57 : f32 to vector<8x32xf32>
    %182 = arith.addf %181, %180 : vector<8x32xf32>
    %183 = arith.divf %181, %182 : vector<8x32xf32>
    %184 = vector.extract_strided_slice %128 {offsets = [0, 64], sizes = [8, 32], strides = [1, 1]} : vector<8x96xf32> to vector<8x32xf32>
    %185 = math.tanh %184 : vector<8x32xf32>
    %186 = arith.mulf %177, %185 : vector<8x32xf32>
    %187 = arith.addf %186, %171 : vector<8x32xf32>
    %188 = math.tanh %187 : vector<8x32xf32>
    %189 = arith.mulf %183, %188 : vector<8x32xf32>
    %190 = tpu.concatenate %187, %189 in 1 : vector<8x32xf32>, vector<8x32xf32> -> vector<8x64xf32>
    %cst_58 = arith.constant dense<0.000000e+00> : vector<16x64xf32>
    %191 = tpu.matmul %107, %190, %cst_58 {dimension_numbers = #tpu.dot_dimension_numbers<[1], [0], [0], [1], [0, 0, 1, 1], [], []>} : vector<16x8xf32>, vector<8x64xf32>, vector<16x64xf32> -> vector<16x64xf32>
    %cst_59 = arith.constant 0.000000e+00 : f32
    %192 = vector.broadcast %cst_59 : f32 to vector<16x1xf32>
    %193 = arith.cmpf ogt, %109, %192 : vector<16x1xf32>
    %194 = vector.shape_cast %193 : vector<16x1xi1> to vector<16x1xi1>
    %195 = vector.broadcast %194 : vector<16x1xi1> to vector<16x64xi1>
    %196 = arith.select %195, %191, %101 : vector<16x64xi1>, vector<16x64xf32>
    %c2 = arith.constant 2 : index
    %c0_60 = arith.constant 0 : index
    %c0_61 = arith.constant 0 : index
    %197 = vector.load %arg0[%c2, %c0_60, %c0_61] : memref<4x8x16xf32, #tpu.memory_space<vmem>>, vector<1x8x16xf32>
    %198 = vector.shape_cast %197 : vector<1x8x16xf32> to vector<8x16xf32>
    %c2_62 = arith.constant 2 : index
    %c0_63 = arith.constant 0 : index
    %c0_64 = arith.constant 0 : index
    %199 = vector.load %arg1[%c2_62, %c0_63, %c0_64] : memref<4x32x16xf32, #tpu.memory_space<vmem>>, vector<1x32x16xf32>
    %200 = vector.shape_cast %199 : vector<1x32x16xf32> to vector<32x16xf32>
    %c2_65 = arith.constant 2 : index
    %c0_66 = arith.constant 0 : index
    %c0_67 = arith.constant 0 : index
    %201 = vector.load %arg2[%c2_65, %c0_66, %c0_67] : memref<4x16x8xf32, #tpu.memory_space<vmem>>, vector<1x16x8xf32>
    %202 = vector.shape_cast %201 : vector<1x16x8xf32> to vector<16x8xf32>
    %c2_68 = arith.constant 2 : index
    %c0_69 = arith.constant 0 : index
    %c0_70 = arith.constant 0 : index
    %203 = vector.load %arg3[%c2_68, %c0_69, %c0_70] : memref<4x16x1xf32, #tpu.memory_space<vmem>>, vector<1x16x1xf32>
    %204 = vector.shape_cast %203 : vector<1x16x1xf32> to vector<16x1xf32>
    %cst_71 = arith.constant dense<0.000000e+00> : vector<8x16xf32>
    %205 = tpu.matmul %198, %0, %cst_71 {dimension_numbers = #tpu.dot_dimension_numbers<[1], [0], [0], [1], [0, 0, 1, 1], [], []>} : vector<8x16xf32>, vector<16x16xf32>, vector<8x16xf32> -> vector<8x16xf32>
    %cst_72 = arith.constant dense<0.000000e+00> : vector<32x64xf32>
    %206 = tpu.matmul %200, %196, %cst_72 {dimension_numbers = #tpu.dot_dimension_numbers<[1], [0], [0], [1], [0, 0, 1, 1], [], []>} : vector<32x16xf32>, vector<16x64xf32>, vector<32x64xf32> -> vector<32x64xf32>
    %207 = vector.extract_strided_slice %206 {offsets = [0, 0], sizes = [32, 32], strides = [1, 1]} : vector<32x64xf32> to vector<32x32xf32>
    %208 = vector.extract_strided_slice %206 {offsets = [0, 32], sizes = [32, 32], strides = [1, 1]} : vector<32x64xf32> to vector<32x32xf32>
    %cst_73 = arith.constant 0.000000e+00 : f32
    %209 = vector.broadcast %cst_73 : f32 to vector<8x32xf32>
    %210 = vector.extract_strided_slice %208 {offsets = [0, 0], sizes = [8, 32], strides = [1, 1]} : vector<32x32xf32> to vector<8x32xf32>
    %211 = arith.addf %209, %210 : vector<8x32xf32>
    %212 = vector.extract_strided_slice %208 {offsets = [8, 0], sizes = [8, 32], strides = [1, 1]} : vector<32x32xf32> to vector<8x32xf32>
    %213 = arith.addf %211, %212 : vector<8x32xf32>
    %214 = vector.extract_strided_slice %208 {offsets = [16, 0], sizes = [8, 32], strides = [1, 1]} : vector<32x32xf32> to vector<8x32xf32>
    %215 = arith.addf %213, %214 : vector<8x32xf32>
    %216 = vector.extract_strided_slice %208 {offsets = [24, 0], sizes = [8, 32], strides = [1, 1]} : vector<32x32xf32> to vector<8x32xf32>
    %217 = arith.addf %215, %216 : vector<8x32xf32>
    %cst_74 = arith.constant dense<0.000000e+00> : vector<8x128xf32>
    %218 = tpu.matmul %205, %1, %cst_74 {dimension_numbers = #tpu.dot_dimension_numbers<[1], [0], [0], [1], [0, 0, 1, 1], [], []>} : vector<8x16xf32>, vector<16x128xf32>, vector<8x128xf32> -> vector<8x128xf32>
    %219 = vector.broadcast %3 : vector<1x128xf32> to vector<8x128xf32>
    %220 = arith.addf %218, %219 : vector<8x128xf32>
    %221 = vector.extract_strided_slice %220 {offsets = [0, 0], sizes = [8, 96], strides = [1, 1]} : vector<8x128xf32> to vector<8x96xf32>
    %cst_75 = arith.constant dense<0.000000e+00> : vector<8x96xf32>
    %222 = tpu.matmul %217, %4, %cst_75 {dimension_numbers = #tpu.dot_dimension_numbers<[1], [0], [0], [1], [0, 0, 1, 1], [], []>} : vector<8x32xf32>, vector<32x96xf32>, vector<8x96xf32> -> vector<8x96xf32>
    %223 = arith.addf %221, %222 : vector<8x96xf32>
    %224 = vector.extract_strided_slice %220 {offsets = [0, 96], sizes = [8, 32], strides = [1, 1]} : vector<8x128xf32> to vector<8x32xf32>
    %cst_76 = arith.constant dense<0.000000e+00> : vector<32x32xf32>
    %225 = tpu.matmul %208, %5, %cst_76 {dimension_numbers = #tpu.dot_dimension_numbers<[1], [0], [0], [1], [0, 0, 1, 1], [], []>} : vector<32x32xf32>, vector<32x32xf32>, vector<32x32xf32> -> vector<32x32xf32>
    %cst_77 = arith.constant 0.000000e+00 : f32
    %226 = vector.broadcast %cst_77 : f32 to vector<8x32xf32>
    %227 = vector.extract_strided_slice %225 {offsets = [0, 0], sizes = [8, 32], strides = [1, 1]} : vector<32x32xf32> to vector<8x32xf32>
    %228 = arith.addf %227, %224 : vector<8x32xf32>
    %229 = arith.negf %228 : vector<8x32xf32>
    %230 = math.exp %229 : vector<8x32xf32>
    %cst_78 = arith.constant 1.000000e+00 : f32
    %231 = vector.broadcast %cst_78 : f32 to vector<8x32xf32>
    %232 = arith.addf %231, %230 : vector<8x32xf32>
    %233 = arith.divf %231, %232 : vector<8x32xf32>
    %234 = vector.extract_strided_slice %207 {offsets = [0, 0], sizes = [8, 32], strides = [1, 1]} : vector<32x32xf32> to vector<8x32xf32>
    %235 = arith.mulf %233, %234 : vector<8x32xf32>
    %236 = arith.addf %226, %235 : vector<8x32xf32>
    %237 = vector.extract_strided_slice %225 {offsets = [8, 0], sizes = [8, 32], strides = [1, 1]} : vector<32x32xf32> to vector<8x32xf32>
    %238 = arith.addf %237, %224 : vector<8x32xf32>
    %239 = arith.negf %238 : vector<8x32xf32>
    %240 = math.exp %239 : vector<8x32xf32>
    %cst_79 = arith.constant 1.000000e+00 : f32
    %241 = vector.broadcast %cst_79 : f32 to vector<8x32xf32>
    %242 = arith.addf %241, %240 : vector<8x32xf32>
    %243 = arith.divf %241, %242 : vector<8x32xf32>
    %244 = vector.extract_strided_slice %207 {offsets = [8, 0], sizes = [8, 32], strides = [1, 1]} : vector<32x32xf32> to vector<8x32xf32>
    %245 = arith.mulf %243, %244 : vector<8x32xf32>
    %246 = arith.addf %236, %245 : vector<8x32xf32>
    %247 = vector.extract_strided_slice %225 {offsets = [16, 0], sizes = [8, 32], strides = [1, 1]} : vector<32x32xf32> to vector<8x32xf32>
    %248 = arith.addf %247, %224 : vector<8x32xf32>
    %249 = arith.negf %248 : vector<8x32xf32>
    %250 = math.exp %249 : vector<8x32xf32>
    %cst_80 = arith.constant 1.000000e+00 : f32
    %251 = vector.broadcast %cst_80 : f32 to vector<8x32xf32>
    %252 = arith.addf %251, %250 : vector<8x32xf32>
    %253 = arith.divf %251, %252 : vector<8x32xf32>
    %254 = vector.extract_strided_slice %207 {offsets = [16, 0], sizes = [8, 32], strides = [1, 1]} : vector<32x32xf32> to vector<8x32xf32>
    %255 = arith.mulf %253, %254 : vector<8x32xf32>
    %256 = arith.addf %246, %255 : vector<8x32xf32>
    %257 = vector.extract_strided_slice %225 {offsets = [24, 0], sizes = [8, 32], strides = [1, 1]} : vector<32x32xf32> to vector<8x32xf32>
    %258 = arith.addf %257, %224 : vector<8x32xf32>
    %259 = arith.negf %258 : vector<8x32xf32>
    %260 = math.exp %259 : vector<8x32xf32>
    %cst_81 = arith.constant 1.000000e+00 : f32
    %261 = vector.broadcast %cst_81 : f32 to vector<8x32xf32>
    %262 = arith.addf %261, %260 : vector<8x32xf32>
    %263 = arith.divf %261, %262 : vector<8x32xf32>
    %264 = vector.extract_strided_slice %207 {offsets = [24, 0], sizes = [8, 32], strides = [1, 1]} : vector<32x32xf32> to vector<8x32xf32>
    %265 = arith.mulf %263, %264 : vector<8x32xf32>
    %266 = arith.addf %256, %265 : vector<8x32xf32>
    %267 = vector.extract_strided_slice %223 {offsets = [0, 0], sizes = [8, 32], strides = [1, 1]} : vector<8x96xf32> to vector<8x32xf32>
    %268 = arith.negf %267 : vector<8x32xf32>
    %269 = math.exp %268 : vector<8x32xf32>
    %cst_82 = arith.constant 1.000000e+00 : f32
    %270 = vector.broadcast %cst_82 : f32 to vector<8x32xf32>
    %271 = arith.addf %270, %269 : vector<8x32xf32>
    %272 = arith.divf %270, %271 : vector<8x32xf32>
    %273 = vector.extract_strided_slice %223 {offsets = [0, 32], sizes = [8, 32], strides = [1, 1]} : vector<8x96xf32> to vector<8x32xf32>
    %274 = arith.negf %273 : vector<8x32xf32>
    %275 = math.exp %274 : vector<8x32xf32>
    %cst_83 = arith.constant 1.000000e+00 : f32
    %276 = vector.broadcast %cst_83 : f32 to vector<8x32xf32>
    %277 = arith.addf %276, %275 : vector<8x32xf32>
    %278 = arith.divf %276, %277 : vector<8x32xf32>
    %279 = vector.extract_strided_slice %223 {offsets = [0, 64], sizes = [8, 32], strides = [1, 1]} : vector<8x96xf32> to vector<8x32xf32>
    %280 = math.tanh %279 : vector<8x32xf32>
    %281 = arith.mulf %272, %280 : vector<8x32xf32>
    %282 = arith.addf %281, %266 : vector<8x32xf32>
    %283 = math.tanh %282 : vector<8x32xf32>
    %284 = arith.mulf %278, %283 : vector<8x32xf32>
    %285 = tpu.concatenate %282, %284 in 1 : vector<8x32xf32>, vector<8x32xf32> -> vector<8x64xf32>
    %cst_84 = arith.constant dense<0.000000e+00> : vector<16x64xf32>
    %286 = tpu.matmul %202, %285, %cst_84 {dimension_numbers = #tpu.dot_dimension_numbers<[1], [0], [0], [1], [0, 0, 1, 1], [], []>} : vector<16x8xf32>, vector<8x64xf32>, vector<16x64xf32> -> vector<16x64xf32>
    %cst_85 = arith.constant 0.000000e+00 : f32
    %287 = vector.broadcast %cst_85 : f32 to vector<16x1xf32>
    %288 = arith.cmpf ogt, %204, %287 : vector<16x1xf32>
    %289 = vector.shape_cast %288 : vector<16x1xi1> to vector<16x1xi1>
    %290 = vector.broadcast %289 : vector<16x1xi1> to vector<16x64xi1>
    %291 = arith.select %290, %286, %196 : vector<16x64xi1>, vector<16x64xf32>
    %c3 = arith.constant 3 : index
    %c0_86 = arith.constant 0 : index
    %c0_87 = arith.constant 0 : index
    %292 = vector.load %arg0[%c3, %c0_86, %c0_87] : memref<4x8x16xf32, #tpu.memory_space<vmem>>, vector<1x8x16xf32>
    %293 = vector.shape_cast %292 : vector<1x8x16xf32> to vector<8x16xf32>
    %c3_88 = arith.constant 3 : index
    %c0_89 = arith.constant 0 : index
    %c0_90 = arith.constant 0 : index
    %294 = vector.load %arg1[%c3_88, %c0_89, %c0_90] : memref<4x32x16xf32, #tpu.memory_space<vmem>>, vector<1x32x16xf32>
    %295 = vector.shape_cast %294 : vector<1x32x16xf32> to vector<32x16xf32>
    %c3_91 = arith.constant 3 : index
    %c0_92 = arith.constant 0 : index
    %c0_93 = arith.constant 0 : index
    %296 = vector.load %arg2[%c3_91, %c0_92, %c0_93] : memref<4x16x8xf32, #tpu.memory_space<vmem>>, vector<1x16x8xf32>
    %297 = vector.shape_cast %296 : vector<1x16x8xf32> to vector<16x8xf32>
    %c3_94 = arith.constant 3 : index
    %c0_95 = arith.constant 0 : index
    %c0_96 = arith.constant 0 : index
    %298 = vector.load %arg3[%c3_94, %c0_95, %c0_96] : memref<4x16x1xf32, #tpu.memory_space<vmem>>, vector<1x16x1xf32>
    %299 = vector.shape_cast %298 : vector<1x16x1xf32> to vector<16x1xf32>
    %cst_97 = arith.constant dense<0.000000e+00> : vector<8x16xf32>
    %300 = tpu.matmul %293, %0, %cst_97 {dimension_numbers = #tpu.dot_dimension_numbers<[1], [0], [0], [1], [0, 0, 1, 1], [], []>} : vector<8x16xf32>, vector<16x16xf32>, vector<8x16xf32> -> vector<8x16xf32>
    %cst_98 = arith.constant dense<0.000000e+00> : vector<32x64xf32>
    %301 = tpu.matmul %295, %291, %cst_98 {dimension_numbers = #tpu.dot_dimension_numbers<[1], [0], [0], [1], [0, 0, 1, 1], [], []>} : vector<32x16xf32>, vector<16x64xf32>, vector<32x64xf32> -> vector<32x64xf32>
    %302 = vector.extract_strided_slice %301 {offsets = [0, 0], sizes = [32, 32], strides = [1, 1]} : vector<32x64xf32> to vector<32x32xf32>
    %303 = vector.extract_strided_slice %301 {offsets = [0, 32], sizes = [32, 32], strides = [1, 1]} : vector<32x64xf32> to vector<32x32xf32>
    %cst_99 = arith.constant 0.000000e+00 : f32
    %304 = vector.broadcast %cst_99 : f32 to vector<8x32xf32>
    %305 = vector.extract_strided_slice %303 {offsets = [0, 0], sizes = [8, 32], strides = [1, 1]} : vector<32x32xf32> to vector<8x32xf32>
    %306 = arith.addf %304, %305 : vector<8x32xf32>
    %307 = vector.extract_strided_slice %303 {offsets = [8, 0], sizes = [8, 32], strides = [1, 1]} : vector<32x32xf32> to vector<8x32xf32>
    %308 = arith.addf %306, %307 : vector<8x32xf32>
    %309 = vector.extract_strided_slice %303 {offsets = [16, 0], sizes = [8, 32], strides = [1, 1]} : vector<32x32xf32> to vector<8x32xf32>
    %310 = arith.addf %308, %309 : vector<8x32xf32>
    %311 = vector.extract_strided_slice %303 {offsets = [24, 0], sizes = [8, 32], strides = [1, 1]} : vector<32x32xf32> to vector<8x32xf32>
    %312 = arith.addf %310, %311 : vector<8x32xf32>
    %cst_100 = arith.constant dense<0.000000e+00> : vector<8x128xf32>
    %313 = tpu.matmul %300, %1, %cst_100 {dimension_numbers = #tpu.dot_dimension_numbers<[1], [0], [0], [1], [0, 0, 1, 1], [], []>} : vector<8x16xf32>, vector<16x128xf32>, vector<8x128xf32> -> vector<8x128xf32>
    %314 = vector.broadcast %3 : vector<1x128xf32> to vector<8x128xf32>
    %315 = arith.addf %313, %314 : vector<8x128xf32>
    %316 = vector.extract_strided_slice %315 {offsets = [0, 0], sizes = [8, 96], strides = [1, 1]} : vector<8x128xf32> to vector<8x96xf32>
    %cst_101 = arith.constant dense<0.000000e+00> : vector<8x96xf32>
    %317 = tpu.matmul %312, %4, %cst_101 {dimension_numbers = #tpu.dot_dimension_numbers<[1], [0], [0], [1], [0, 0, 1, 1], [], []>} : vector<8x32xf32>, vector<32x96xf32>, vector<8x96xf32> -> vector<8x96xf32>
    %318 = arith.addf %316, %317 : vector<8x96xf32>
    %319 = vector.extract_strided_slice %315 {offsets = [0, 96], sizes = [8, 32], strides = [1, 1]} : vector<8x128xf32> to vector<8x32xf32>
    %cst_102 = arith.constant dense<0.000000e+00> : vector<32x32xf32>
    %320 = tpu.matmul %303, %5, %cst_102 {dimension_numbers = #tpu.dot_dimension_numbers<[1], [0], [0], [1], [0, 0, 1, 1], [], []>} : vector<32x32xf32>, vector<32x32xf32>, vector<32x32xf32> -> vector<32x32xf32>
    %cst_103 = arith.constant 0.000000e+00 : f32
    %321 = vector.broadcast %cst_103 : f32 to vector<8x32xf32>
    %322 = vector.extract_strided_slice %320 {offsets = [0, 0], sizes = [8, 32], strides = [1, 1]} : vector<32x32xf32> to vector<8x32xf32>
    %323 = arith.addf %322, %319 : vector<8x32xf32>
    %324 = arith.negf %323 : vector<8x32xf32>
    %325 = math.exp %324 : vector<8x32xf32>
    %cst_104 = arith.constant 1.000000e+00 : f32
    %326 = vector.broadcast %cst_104 : f32 to vector<8x32xf32>
    %327 = arith.addf %326, %325 : vector<8x32xf32>
    %328 = arith.divf %326, %327 : vector<8x32xf32>
    %329 = vector.extract_strided_slice %302 {offsets = [0, 0], sizes = [8, 32], strides = [1, 1]} : vector<32x32xf32> to vector<8x32xf32>
    %330 = arith.mulf %328, %329 : vector<8x32xf32>
    %331 = arith.addf %321, %330 : vector<8x32xf32>
    %332 = vector.extract_strided_slice %320 {offsets = [8, 0], sizes = [8, 32], strides = [1, 1]} : vector<32x32xf32> to vector<8x32xf32>
    %333 = arith.addf %332, %319 : vector<8x32xf32>
    %334 = arith.negf %333 : vector<8x32xf32>
    %335 = math.exp %334 : vector<8x32xf32>
    %cst_105 = arith.constant 1.000000e+00 : f32
    %336 = vector.broadcast %cst_105 : f32 to vector<8x32xf32>
    %337 = arith.addf %336, %335 : vector<8x32xf32>
    %338 = arith.divf %336, %337 : vector<8x32xf32>
    %339 = vector.extract_strided_slice %302 {offsets = [8, 0], sizes = [8, 32], strides = [1, 1]} : vector<32x32xf32> to vector<8x32xf32>
    %340 = arith.mulf %338, %339 : vector<8x32xf32>
    %341 = arith.addf %331, %340 : vector<8x32xf32>
    %342 = vector.extract_strided_slice %320 {offsets = [16, 0], sizes = [8, 32], strides = [1, 1]} : vector<32x32xf32> to vector<8x32xf32>
    %343 = arith.addf %342, %319 : vector<8x32xf32>
    %344 = arith.negf %343 : vector<8x32xf32>
    %345 = math.exp %344 : vector<8x32xf32>
    %cst_106 = arith.constant 1.000000e+00 : f32
    %346 = vector.broadcast %cst_106 : f32 to vector<8x32xf32>
    %347 = arith.addf %346, %345 : vector<8x32xf32>
    %348 = arith.divf %346, %347 : vector<8x32xf32>
    %349 = vector.extract_strided_slice %302 {offsets = [16, 0], sizes = [8, 32], strides = [1, 1]} : vector<32x32xf32> to vector<8x32xf32>
    %350 = arith.mulf %348, %349 : vector<8x32xf32>
    %351 = arith.addf %341, %350 : vector<8x32xf32>
    %352 = vector.extract_strided_slice %320 {offsets = [24, 0], sizes = [8, 32], strides = [1, 1]} : vector<32x32xf32> to vector<8x32xf32>
    %353 = arith.addf %352, %319 : vector<8x32xf32>
    %354 = arith.negf %353 : vector<8x32xf32>
    %355 = math.exp %354 : vector<8x32xf32>
    %cst_107 = arith.constant 1.000000e+00 : f32
    %356 = vector.broadcast %cst_107 : f32 to vector<8x32xf32>
    %357 = arith.addf %356, %355 : vector<8x32xf32>
    %358 = arith.divf %356, %357 : vector<8x32xf32>
    %359 = vector.extract_strided_slice %302 {offsets = [24, 0], sizes = [8, 32], strides = [1, 1]} : vector<32x32xf32> to vector<8x32xf32>
    %360 = arith.mulf %358, %359 : vector<8x32xf32>
    %361 = arith.addf %351, %360 : vector<8x32xf32>
    %362 = vector.extract_strided_slice %318 {offsets = [0, 0], sizes = [8, 32], strides = [1, 1]} : vector<8x96xf32> to vector<8x32xf32>
    %363 = arith.negf %362 : vector<8x32xf32>
    %364 = math.exp %363 : vector<8x32xf32>
    %cst_108 = arith.constant 1.000000e+00 : f32
    %365 = vector.broadcast %cst_108 : f32 to vector<8x32xf32>
    %366 = arith.addf %365, %364 : vector<8x32xf32>
    %367 = arith.divf %365, %366 : vector<8x32xf32>
    %368 = vector.extract_strided_slice %318 {offsets = [0, 32], sizes = [8, 32], strides = [1, 1]} : vector<8x96xf32> to vector<8x32xf32>
    %369 = arith.negf %368 : vector<8x32xf32>
    %370 = math.exp %369 : vector<8x32xf32>
    %cst_109 = arith.constant 1.000000e+00 : f32
    %371 = vector.broadcast %cst_109 : f32 to vector<8x32xf32>
    %372 = arith.addf %371, %370 : vector<8x32xf32>
    %373 = arith.divf %371, %372 : vector<8x32xf32>
    %374 = vector.extract_strided_slice %318 {offsets = [0, 64], sizes = [8, 32], strides = [1, 1]} : vector<8x96xf32> to vector<8x32xf32>
    %375 = math.tanh %374 : vector<8x32xf32>
    %376 = arith.mulf %367, %375 : vector<8x32xf32>
    %377 = arith.addf %376, %361 : vector<8x32xf32>
    %378 = math.tanh %377 : vector<8x32xf32>
    %379 = arith.mulf %373, %378 : vector<8x32xf32>
    %380 = tpu.concatenate %377, %379 in 1 : vector<8x32xf32>, vector<8x32xf32> -> vector<8x64xf32>
    %cst_110 = arith.constant dense<0.000000e+00> : vector<16x64xf32>
    %381 = tpu.matmul %297, %380, %cst_110 {dimension_numbers = #tpu.dot_dimension_numbers<[1], [0], [0], [1], [0, 0, 1, 1], [], []>} : vector<16x8xf32>, vector<8x64xf32>, vector<16x64xf32> -> vector<16x64xf32>
    %cst_111 = arith.constant 0.000000e+00 : f32
    %382 = vector.broadcast %cst_111 : f32 to vector<16x1xf32>
    %383 = arith.cmpf ogt, %299, %382 : vector<16x1xf32>
    %384 = vector.shape_cast %383 : vector<16x1xi1> to vector<16x1xi1>
    %385 = vector.broadcast %384 : vector<16x1xi1> to vector<16x64xi1>
    %386 = arith.select %385, %381, %291 : vector<16x64xi1>, vector<16x64xf32>
    %c0_112 = arith.constant 0 : index
    %c0_113 = arith.constant 0 : index
    %387 = vector.load %arg8[%c0_112, %c0_113] : memref<16x64xf32, #tpu.memory_space<vmem>>, vector<16x64xf32>
    tpu.vector_store %arg8[%c0_112, %c0_113], %386 {strides = array<i32>} : memref<16x64xf32, #tpu.memory_space<vmem>>, vector<16x64xf32>,
    return
  }
}

</mosaic_0001>

<llo_original>
// kernel: tree_lstm_forest.1
$region0: #{tree_lstm_forest.1}
  #allocation0 [shape = 'u32[]', space=smem, size = 0x4, offset = 0x4, fixed_abs, tag = 'smem constant byte address 0x4 - core index']
  #allocation1 [shape = 'u32[72,128]{1,0:T(1,128)}', space=vmem, size = 0x9000, scoped, tag = 'internal scratch']
  %s0 = inlined_call_operand.vmem [shape: f32[4,8,16], index: 0, kind: input, shape index: {}]
  %s1 = inlined_call_operand.vmem [shape: f32[4,32,16], index: 1, kind: input, shape index: {}]
  %s2 = inlined_call_operand.vmem [shape: f32[4,16,8], index: 2, kind: input, shape index: {}]
  %s3 = inlined_call_operand.vmem [shape: f32[4,16,1], index: 3, kind: input, shape index: {}]
  %s4 = inlined_call_operand.vmem [shape: f32[16,16], index: 4, kind: input, shape index: {}]
  %s5 = inlined_call_operand.vmem [shape: f32[16,128], index: 5, kind: input, shape index: {}]
  %s6 = inlined_call_operand.vmem [shape: f32[32,128], index: 6, kind: input, shape index: {}]
  %s7 = inlined_call_operand.vmem [shape: f32[1,128], index: 7, kind: input, shape index: {}]
  %s8 = inlined_call_operand.vmem [shape: f32[16,64], index: 8, kind: output, shape index: {}]
  %s9 = sld [smem:[#allocation0]]
  $region42: #{tree_lstm_forest.1} parent=0
    _
  %s11 = ssub.s32 1, %s9
  %s12 = scalar_select 0, %s11, %s9
  // Predicated region
  $region2: #{tree_lstm_forest.1} parent=0 // pred_check
    _
  $region3: #{tree_lstm_forest.1} parent=0 // pred_check_branch
    %14 = sbr.rel (0) target = $region5
  $region4: #{tree_lstm_forest.1} parent=0 // pred_region
    _
  $region5: #{tree_lstm_forest.1} parent=0 // pred_fallthru
    _
  // Predicated region
  $region6: #{tree_lstm_forest.1} parent=0 // pred_check
    _
  $region7: #{tree_lstm_forest.1} parent=0 // pred_check_branch
    %16 = sbr.rel (0) target = $region9
  $region8: #{tree_lstm_forest.1} parent=0 // pred_region
    _
  $region9: #{tree_lstm_forest.1} parent=0 // pred_fallthru
    _
  // Predicated region
  $region10: #{tree_lstm_forest.1} parent=0 // pred_check
    _
  $region11: #{tree_lstm_forest.1} parent=0 // pred_check_branch
    %18 = sbr.rel (0) target = $region13
  $region12: #{tree_lstm_forest.1} parent=0 // pred_region
    _
  $region13: #{tree_lstm_forest.1} parent=0 // pred_fallthru
    _
  // Predicated region
  $region14: #{tree_lstm_forest.1} parent=0 // pred_check
    _
  $region15: #{tree_lstm_forest.1} parent=0 // pred_check_branch
    %20 = sbr.rel (0) target = $region17
  $region16: #{tree_lstm_forest.1} parent=0 // pred_region
    _
  $region17: #{tree_lstm_forest.1} parent=0 // pred_fallthru
    _
  // Predicated region
  $region18: #{tree_lstm_forest.1} parent=0 // pred_check
    _
  $region19: #{tree_lstm_forest.1} parent=0 // pred_check_branch
    %22 = sbr.rel (0) target = $region21
  $region20: #{tree_lstm_forest.1} parent=0 // pred_region
    _
  $region21: #{tree_lstm_forest.1} parent=0 // pred_fallthru
    _
  // Predicated region
  $region22: #{tree_lstm_forest.1} parent=0 // pred_check
    _
  $region23: #{tree_lstm_forest.1} parent=0 // pred_check_branch
    %24 = sbr.rel (0) target = $region25
  $region24: #{tree_lstm_forest.1} parent=0 // pred_region
    _
  $region25: #{tree_lstm_forest.1} parent=0 // pred_fallthru
    _
  // Predicated region
  $region26: #{tree_lstm_forest.1} parent=0 // pred_check
    _
  $region27: #{tree_lstm_forest.1} parent=0 // pred_check_branch
    %26 = sbr.rel (0) target = $region29
  $region28: #{tree_lstm_forest.1} parent=0 // pred_region
    _
  $region29: #{tree_lstm_forest.1} parent=0 // pred_fallthru
    _
  // Predicated region
  $region30: #{tree_lstm_forest.1} parent=0 // pred_check
    _
  $region31: #{tree_lstm_forest.1} parent=0 // pred_check_branch
    %28 = sbr.rel (0) target = $region33
  $region32: #{tree_lstm_forest.1} parent=0 // pred_region
    _
  $region33: #{tree_lstm_forest.1} parent=0 // pred_fallthru
    _
  %v29 = vld [vmem:[%s4] sm:$0xff]
  %v30 = vld [vmem:[%s4 + $0x8] sm:$0xff]
  %v31 = vld [vmem:[%s5] sm:$0xff]
  %v32 = vld [vmem:[%s5 + $0x8] sm:$0xff]
  %v33 = vld [vmem:[%s6] sm:$0xff]
  %v34 = vld [vmem:[%s6 + $0x8] sm:$0xff]
  %v35 = vld [vmem:[%s6 + $0x10] sm:$0xff]
  %v36 = vld [vmem:[%s6 + $0x18] sm:$0xff]
  %v37 = vld [vmem:[%s7] sm:$0x1]
  %v38 = vld [vmem:[%s0] sm:$0xff]
  %v39 = vld [vmem:[%s1] sm:$0xff]
  %v40 = vld [vmem:[%s1 + $0x8] sm:$0xff]
  %v41 = vld [vmem:[%s1 + $0x10] sm:$0xff]
  %v42 = vld [vmem:[%s1 + $0x18] sm:$0xff]
  %v43 = vld [vmem:[%s2] sm:$0xff]
  %v44 = vld [vmem:[%s2 + $0x8] sm:$0xff]
  %v45 = vld [vmem:[%s3] sm:$0xff]
  %v46 = vld [vmem:[%s3 + $0x8] sm:$0xff]
  %vm47 = vcmask 130048
  %v49 = vsel %vm47, %v38, 0
  %51 = vmatpush.msra.mxu0 0.0
  %52 = vmatpush.msra.mxu0 0.0
  %53 = vmatpush.msra.mxu0 0.0
  %54 = vmatpush.msra.mxu0 0.0
  %55 = vmatpush.msra.mxu0 0.0
  %56 = vmatpush.msra.mxu0 0.0
  %57 = vmatpush.msra.mxu0 0.0
  %58 = vmatpush.msra.mxu0 0.0
  %59 = vmatpush.msra.mxu0 0.0
  %60 = vmatpush.msra.mxu0 0.0
  %61 = vmatpush.msra.mxu0 0.0
  %62 = vmatpush.msra.mxu0 0.0
  %63 = vmatpush.msra.mxu0 0.0
  %64 = vmatpush.msra.mxu0 0.0
  %65 = vmatpush.msra.mxu0 %v30
  %66 = vmatpush.msra.mxu0 %v29
  %67 = vmatmul.f32.gmra.mxu0 %v49
  %v68 = vpop.f32.mrf.mxu0
  %v69 = vadd.f32 0.0, %v68
  %70 = vdwg.mxu0
  %v72 = vsel %vm47, %v39, 0
  %v75 = vsel %vm47, %v40, 0
  %v78 = vsel %vm47, %v41, 0
  %v81 = vsel %vm47, %v42, 0
  %83 = vmatpush.msra.mxu0 0.0
  %84 = vmatpush.msra.mxu0 0.0
  %85 = vmatpush.msra.mxu0 0.0
  %86 = vmatpush.msra.mxu0 0.0
  %87 = vmatpush.msra.mxu0 0.0
  %88 = vmatpush.msra.mxu0 0.0
  %89 = vmatpush.msra.mxu0 0.0
  %90 = vmatpush.msra.mxu0 0.0
  %91 = vmatpush.msra.mxu0 0.0
  %92 = vmatpush.msra.mxu0 0.0
  %93 = vmatpush.msra.mxu0 0.0
  %94 = vmatpush.msra.mxu0 0.0
  %95 = vmatpush.msra.mxu0 0.0
  %96 = vmatpush.msra.mxu0 0.0
  %97 = vmatpush.msra.mxu0 0.0
  %98 = vmatpush.msra.mxu0 0.0
  %99 = vmatmul.f32.gmra.mxu0 %v72
  %v100 = vpop.f32.mrf.mxu0
  %v101 = vadd.f32 0.0, %v100
  %102 = vmatmul.f32.gmra.mxu0 %v75
  %v103 = vpop.f32.mrf.mxu0
  %v104 = vadd.f32 0.0, %v103
  %105 = vmatmul.f32.gmra.mxu0 %v78
  %v106 = vpop.f32.mrf.mxu0
  %v107 = vadd.f32 0.0, %v106
  %108 = vmatmul.f32.gmra.mxu0 %v81
  %v109 = vpop.f32.mrf.mxu0
  %v110 = vadd.f32 0.0, %v109
  %111 = vdwg.mxu0
  %v112 = vadd.f32 %v101, 0.0
  %v113 = vadd.f32 %v112, %v104
  %v114 = vadd.f32 %v113, %v107
  %v115 = vadd.f32 %v114, %v110
  %v117 = vperm.slane %v37, 0
  %v120 = vsel %vm47, %v69, 0
  %122 = vmatpush.msra.mxu0 0.0
  %123 = vmatpush.msra.mxu0 0.0
  %124 = vmatpush.msra.mxu0 0.0
  %125 = vmatpush.msra.mxu0 0.0
  %126 = vmatpush.msra.mxu0 0.0
  %127 = vmatpush.msra.mxu0 0.0
  %128 = vmatpush.msra.mxu0 0.0
  %129 = vmatpush.msra.mxu0 0.0
  %130 = vmatpush.msra.mxu0 0.0
  %131 = vmatpush.msra.mxu0 0.0
  %132 = vmatpush.msra.mxu0 0.0
  %133 = vmatpush.msra.mxu0 0.0
  %134 = vmatpush.msra.mxu0 0.0
  %135 = vmatpush.msra.mxu0 0.0
  %136 = vmatpush.msra.mxu0 %v32
  %137 = vmatpush.msra.mxu0 %v31
  %138 = vmatmul.f32.gmra.mxu0 %v120
  %v139 = vpop.f32.mrf.mxu0
  %v140 = vadd.f32 %v117, %v139
  %141 = vdwg.mxu0
  %143 = vrot.lane.b32.xlu0 %v115, 96
  %v144 = vpop.permute.xlu0 %143
  %vm145 = vcmask 261120
  %v146 = vsel %vm145, %v144, 0
  %148 = vmatpush.msra.mxu0 0.0
  %149 = vmatpush.msra.mxu0 0.0
  %150 = vmatpush.msra.mxu0 0.0
  %151 = vmatpush.msra.mxu0 0.0
  %152 = vmatpush.msra.mxu0 0.0
  %153 = vmatpush.msra.mxu0 0.0
  %154 = vmatpush.msra.mxu0 0.0
  %155 = vmatpush.msra.mxu0 0.0
  %156 = vmatpush.msra.mxu0 0.0
  %157 = vmatpush.msra.mxu0 0.0
  %158 = vmatpush.msra.mxu0 0.0
  %159 = vmatpush.msra.mxu0 0.0
  %160 = vmatpush.msra.mxu0 %v36
  %161 = vmatpush.msra.mxu0 %v35
  %162 = vmatpush.msra.mxu0 %v34
  %163 = vmatpush.msra.mxu0 %v33
  %164 = vmatmul.f32.gmra.mxu0 %v146
  %v165 = vpop.f32.mrf.mxu0
  %v166 = vadd.f32 0.0, %v165
  %167 = vdwg.mxu0
  %v168 = vadd.f32 %v140, %v166
  %173 = vrot.lane.b32.xlu0 %v101, 96
  %v174 = vpop.permute.xlu0 %173
  %175 = vrot.lane.b32.xlu0 %v104, 96
  %v176 = vpop.permute.xlu0 %175
  %177 = vrot.lane.b32.xlu0 %v107, 96
  %v178 = vpop.permute.xlu0 %177
  %179 = vrot.lane.b32.xlu0 %v110, 96
  %v180 = vpop.permute.xlu0 %179
  %185 = vrot.lane.b32.xlu0 %v33, 32
  %v186 = vpop.permute.xlu0 %185
  %187 = vrot.lane.b32.xlu0 %v34, 32
  %v188 = vpop.permute.xlu0 %187
  %189 = vrot.lane.b32.xlu0 %v35, 32
  %v190 = vpop.permute.xlu0 %189
  %191 = vrot.lane.b32.xlu0 %v36, 32
  %v192 = vpop.permute.xlu0 %191
  %v197 = vsel %vm145, %v174, 0
  %v199 = vsel %vm145, %v176, 0
  %v201 = vsel %vm145, %v178, 0
  %v203 = vsel %vm145, %v180, 0
  %205 = vmatpush.msra.mxu0 0.0
  %206 = vmatpush.msra.mxu0 0.0
  %207 = vmatpush.msra.mxu0 0.0
  %208 = vmatpush.msra.mxu0 0.0
  %209 = vmatpush.msra.mxu0 0.0
  %210 = vmatpush.msra.mxu0 0.0
  %211 = vmatpush.msra.mxu0 0.0
  %212 = vmatpush.msra.mxu0 0.0
  %213 = vmatpush.msra.mxu0 0.0
  %214 = vmatpush.msra.mxu0 0.0
  %215 = vmatpush.msra.mxu0 0.0
  %216 = vmatpush.msra.mxu0 0.0
  %217 = vmatpush.msra.mxu0 %v192
  %218 = vmatpush.msra.mxu0 %v190
  %219 = vmatpush.msra.mxu0 %v188
  %220 = vmatpush.msra.mxu0 %v186
  %221 = vmatmul.f32.gmra.mxu0 %v197
  %v222 = vpop.f32.mrf.mxu0
  %v223 = vadd.f32 0.0, %v222
  %224 = vmatmul.f32.gmra.mxu0 %v199
  %v225 = vpop.f32.mrf.mxu0
  %v226 = vadd.f32 0.0, %v225
  %227 = vmatmul.f32.gmra.mxu0 %v201
  %v228 = vpop.f32.mrf.mxu0
  %v229 = vadd.f32 0.0, %v228
  %230 = vmatmul.f32.gmra.mxu0 %v203
  %v231 = vpop.f32.mrf.mxu0
  %v232 = vadd.f32 0.0, %v231
  %233 = vdwg.mxu0
  %235 = vrot.lane.b32.xlu0 %v140, 32
  %v236 = vpop.permute.xlu0 %235
  %v238 = vadd.f32 %v223, %v236
  %v239 = vxor.u32 %v238, 2147483648
  %v240 = vmul.f32 %v239, 1.442695
  %v241 = vpow.pop %v240
  %v242 = vadd.f32 %v241, 1.0
  %v243 = vrcp.pop %v242
  %v244 = vmul.f32 %v242, %v243
  %v245 = vsub.f32 1.0, %v244
  %v246 = vmul.f32 %v243, %v245
  %v247 = vadd.f32 %v243, %v246
  %vm248 = vweird.f32 %v242
  %vm249 = vweird.f32 %v243
  %vm250 = vmor %vm248, %vm249
  %v251 = vsel %vm250, %v243, %v247
  %v252 = vand.u32 2147483647, %v242
  %vm253 = vcmp.eq.f32.partialorder %v252, 8.507059e+37
  %v254 = vand.u32 %v242, 2147483648
  %v255 = vor.u32 1.1754944e-38, %v254
  %v256 = vsel %vm253, %v255, %v251
  %v257 = vmul.f32 1.0, %v256
  %v258 = vmul.f32 %v257, %v101
  %v259 = vadd.f32 %v258, 0.0
  %v260 = vadd.f32 %v226, %v236
  %v261 = vxor.u32 %v260, 2147483648
  %v262 = vmul.f32 %v261, 1.442695
  %v263 = vpow.pop %v262
  %v264 = vadd.f32 %v263, 1.0
  %v265 = vrcp.pop %v264
  %v266 = vmul.f32 %v264, %v265
  %v267 = vsub.f32 1.0, %v266
  %v268 = vmul.f32 %v265, %v267
  %v269 = vadd.f32 %v265, %v268
  %vm270 = vweird.f32 %v264
  %vm271 = vweird.f32 %v265
  %vm272 = vmor %vm270, %vm271
  %v273 = vsel %vm272, %v265, %v269
  %v274 = vand.u32 2147483647, %v264
  %vm275 = vcmp.eq.f32.partialorder %v274, 8.507059e+37
  %v276 = vand.u32 %v264, 2147483648
  %v277 = vor.u32 1.1754944e-38, %v276
  %v278 = vsel %vm275, %v277, %v273
  %v279 = vmul.f32 1.0, %v278
  %v280 = vmul.f32 %v279, %v104
  %v281 = vadd.f32 %v259, %v280
  %v282 = vadd.f32 %v229, %v236
  %v283 = vxor.u32 %v282, 2147483648
  %v284 = vmul.f32 %v283, 1.442695
  %v285 = vpow.pop %v284
  %v286 = vadd.f32 %v285, 1.0
  %v287 = vrcp.pop %v286
  %v288 = vmul.f32 %v286, %v287
  %v289 = vsub.f32 1.0, %v288
  %v290 = vmul.f32 %v287, %v289
  %v291 = vadd.f32 %v287, %v290
  %vm292 = vweird.f32 %v286
  %vm293 = vweird.f32 %v287
  %vm294 = vmor %vm292, %vm293
  %v295 = vsel %vm294, %v287, %v291
  %v296 = vand.u32 2147483647, %v286
  %vm297 = vcmp.eq.f32.partialorder %v296, 8.507059e+37
  %v298 = vand.u32 %v286, 2147483648
  %v299 = vor.u32 1.1754944e-38, %v298
  %v300 = vsel %vm297, %v299, %v295
  %v301 = vmul.f32 1.0, %v300
  %v302 = vmul.f32 %v301, %v107
  %v303 = vadd.f32 %v281, %v302
  %v304 = vadd.f32 %v232, %v236
  %v305 = vxor.u32 %v304, 2147483648
  %v306 = vmul.f32 %v305, 1.442695
  %v307 = vpow.pop %v306
  %v308 = vadd.f32 %v307, 1.0
  %v309 = vrcp.pop %v308
  %v310 = vmul.f32 %v308, %v309
  %v311 = vsub.f32 1.0, %v310
  %v312 = vmul.f32 %v309, %v311
  %v313 = vadd.f32 %v309, %v312
  %vm314 = vweird.f32 %v308
  %vm315 = vweird.f32 %v309
  %vm316 = vmor %vm314, %vm315
  %v317 = vsel %vm316, %v309, %v313
  %v318 = vand.u32 2147483647, %v308
  %vm319 = vcmp.eq.f32.partialorder %v318, 8.507059e+37
  %v320 = vand.u32 %v308, 2147483648
  %v321 = vor.u32 1.1754944e-38, %v320
  %v322 = vsel %vm319, %v321, %v317
  %v323 = vmul.f32 1.0, %v322
  %v324 = vmul.f32 %v323, %v110
  %v325 = vadd.f32 %v303, %v324
  %v326 = vxor.u32 %v168, 2147483648
  %v327 = vmul.f32 %v326, 1.442695
  %v328 = vpow.pop %v327
  %v329 = vadd.f32 %v328, 1.0
  %v330 = vrcp.pop %v329
  %v331 = vmul.f32 %v329, %v330
  %v332 = vsub.f32 1.0, %v331
  %v333 = vmul.f32 %v330, %v332
  %v334 = vadd.f32 %v330, %v333
  %vm335 = vweird.f32 %v329
  %vm336 = vweird.f32 %v330
  %vm337 = vmor %vm335, %vm336
  %v338 = vsel %vm337, %v330, %v334
  %v339 = vand.u32 2147483647, %v329
  %vm340 = vcmp.eq.f32.partialorder %v339, 8.507059e+37
  %v341 = vand.u32 %v329, 2147483648
  %v342 = vor.u32 1.1754944e-38, %v341
  %v343 = vsel %vm340, %v342, %v338
  %v344 = vmul.f32 1.0, %v343
  %v345 = vtanh.pop %v168
  %347 = vrot.lane.b32.xlu0 %v345, 64
  %v348 = vpop.permute.xlu0 %347
  %v350 = vmul.f32 %v344, %v348
  %v351 = vadd.f32 %v350, %v325
  %v352 = vtanh.pop %v351
  %354 = vrot.lane.b32.xlu0 %v352, 32
  %v355 = vpop.permute.xlu0 %354
  %v357 = vmul.f32 %v344, %v355
  %v358 = vsel %vm145, %v351, %v357
  %vm359 = vcmask 64512
  %v361 = vsel %vm359, %v43, 0
  %v364 = vsel %vm359, %v44, 0
  %366 = vmatpush.msra.mxu0 0.0
  %367 = vmatpush.msra.mxu0 0.0
  %368 = vmatpush.msra.mxu0 0.0
  %369 = vmatpush.msra.mxu0 0.0
  %370 = vmatpush.msra.mxu0 0.0
  %371 = vmatpush.msra.mxu0 0.0
  %372 = vmatpush.msra.mxu0 0.0
  %373 = vmatpush.msra.mxu0 0.0
  %374 = vmatpush.msra.mxu0 0.0
  %375 = vmatpush.msra.mxu0 0.0
  %376 = vmatpush.msra.mxu0 0.0
  %377 = vmatpush.msra.mxu0 0.0
  %378 = vmatpush.msra.mxu0 0.0
  %379 = vmatpush.msra.mxu0 0.0
  %380 = vmatpush.msra.mxu0 0.0
  %381 = vmatpush.msra.mxu0 %v358
  %382 = vmatmul.f32.gmra.mxu0 %v361
  %v383 = vpop.f32.mrf.mxu0
  %v384 = vadd.f32 0.0, %v383
  %385 = vmatmul.f32.gmra.mxu0 %v364
  %v386 = vpop.f32.mrf.mxu0
  %v387 = vadd.f32 0.0, %v386
  %388 = vdwg.mxu0
  %vm389 = vcmp.gt.f32.partialorder %v45, 0.0
  %vm390 = vcmp.gt.f32.partialorder %v46, 0.0
  %v391 = vsel %vm389, 1, 0
  %v392 = vsel %vm390, 1, 0
  %393 = vset.pattern.permute.xlu0 0
  %394 = vperm.xlu0 %393, %v391
  %v395 = vpop.permute.xlu0 %394
  %396 = vset.pattern.permute.xlu0 0
  %397 = vperm.xlu0 %396, %v392
  %v398 = vpop.permute.xlu0 %397
  %vm399 = vcmp.eq.s32.totalorder %v395, 1
  %vm400 = vcmp.eq.s32.totalorder %v398, 1
  %v401 = vsel %vm399, %v384, 0.0
  %v402 = vsel %vm400, %v387, 0.0
  %s403 = scalar_lea.vmem %s0, 8
  %v404 = vld [vmem:[%s403] sm:$0xff]
  %s405 = scalar_lea.vmem %s1, 32
  %v406 = vld [vmem:[%s405] sm:$0xff]
  %v407 = vld [vmem:[%s405 + $0x8] sm:$0xff]
  %v408 = vld [vmem:[%s405 + $0x10] sm:$0xff]
  %v409 = vld [vmem:[%s405 + $0x18] sm:$0xff]
  %s410 = scalar_lea.vmem %s2, 16
  %v411 = vld [vmem:[%s410] sm:$0xff]
  %v412 = vld [vmem:[%s410 + $0x8] sm:$0xff]
  %s413 = scalar_lea.vmem %s3, 16
  %v414 = vld [vmem:[%s413] sm:$0xff]
  %v415 = vld [vmem:[%s413 + $0x8] sm:$0xff]
  %v417 = vsel %vm47, %v404, 0
  %419 = vmatpush.msra.mxu0 0.0
  %420 = vmatpush.msra.mxu0 0.0
  %421 = vmatpush.msra.mxu0 0.0
  %422 = vmatpush.msra.mxu0 0.0
  %423 = vmatpush.msra.mxu0 0.0
  %424 = vmatpush.msra.mxu0 0.0
  %425 = vmatpush.msra.mxu0 0.0
  %426 = vmatpush.msra.mxu0 0.0
  %427 = vmatpush.msra.mxu0 0.0
  %428 = vmatpush.msra.mxu0 0.0
  %429 = vmatpush.msra.mxu0 0.0
  %430 = vmatpush.msra.mxu0 0.0
  %431 = vmatpush.msra.mxu0 0.0
  %432 = vmatpush.msra.mxu0 0.0
  %433 = vmatpush.msra.mxu0 %v30
  %434 = vmatpush.msra.mxu0 %v29
  %435 = vmatmul.f32.gmra.mxu0 %v417
  %v436 = vpop.f32.mrf.mxu0
  %v437 = vadd.f32 0.0, %v436
  %438 = vdwg.mxu0
  %v440 = vsel %vm47, %v406, 0
  %v443 = vsel %vm47, %v407, 0
  %v446 = vsel %vm47, %v408, 0
  %v449 = vsel %vm47, %v409, 0
  %451 = vmatpush.msra.mxu0 0.0
  %452 = vmatpush.msra.mxu0 0.0
  %453 = vmatpush.msra.mxu0 0.0
  %454 = vmatpush.msra.mxu0 0.0
  %455 = vmatpush.msra.mxu0 0.0
  %456 = vmatpush.msra.mxu0 0.0
  %457 = vmatpush.msra.mxu0 0.0
  %458 = vmatpush.msra.mxu0 0.0
  %459 = vmatpush.msra.mxu0 0.0
  %460 = vmatpush.msra.mxu0 0.0
  %461 = vmatpush.msra.mxu0 0.0
  %462 = vmatpush.msra.mxu0 0.0
  %463 = vmatpush.msra.mxu0 0.0
  %464 = vmatpush.msra.mxu0 0.0
  %465 = vmatpush.msra.mxu0 %v402
  %466 = vmatpush.msra.mxu0 %v401
  %467 = vmatmul.f32.gmra.mxu0 %v440
  %v468 = vpop.f32.mrf.mxu0
  %v469 = vadd.f32 0.0, %v468
  %470 = vmatmul.f32.gmra.mxu0 %v443
  %v471 = vpop.f32.mrf.mxu0
  %v472 = vadd.f32 0.0, %v471
  %473 = vmatmul.f32.gmra.mxu0 %v446
  %v474 = vpop.f32.mrf.mxu0
  %v475 = vadd.f32 0.0, %v474
  %476 = vmatmul.f32.gmra.mxu0 %v449
  %v477 = vpop.f32.mrf.mxu0
  %v478 = vadd.f32 0.0, %v477
  %479 = vdwg.mxu0
  %v480 = vadd.f32 %v469, 0.0
  %v481 = vadd.f32 %v480, %v472
  %v482 = vadd.f32 %v481, %v475
  %v483 = vadd.f32 %v482, %v478
  %v485 = vsel %vm47, %v437, 0
  %487 = vmatpush.msra.mxu0 0.0
  %488 = vmatpush.msra.mxu0 0.0
  %489 = vmatpush.msra.mxu0 0.0
  %490 = vmatpush.msra.mxu0 0.0
  %491 = vmatpush.msra.mxu0 0.0
  %492 = vmatpush.msra.mxu0 0.0
  %493 = vmatpush.msra.mxu0 0.0
  %494 = vmatpush.msra.mxu0 0.0
  %495 = vmatpush.msra.mxu0 0.0
  %496 = vmatpush.msra.mxu0 0.0
  %497 = vmatpush.msra.mxu0 0.0
  %498 = vmatpush.msra.mxu0 0.0
  %499 = vmatpush.msra.mxu0 0.0
  %500 = vmatpush.msra.mxu0 0.0
  %501 = vmatpush.msra.mxu0 %v32
  %502 = vmatpush.msra.mxu0 %v31
  %503 = vmatmul.f32.gmra.mxu0 %v485
  %v504 = vpop.f32.mrf.mxu0
  %v505 = vadd.f32 %v117, %v504
  %506 = vdwg.mxu0
  %508 = vrot.lane.b32.xlu0 %v483, 96
  %v509 = vpop.permute.xlu0 %508
  %v510 = vsel %vm145, %v509, 0
  %512 = vmatpush.msra.mxu0 0.0
  %513 = vmatpush.msra.mxu0 0.0
  %514 = vmatpush.msra.mxu0 0.0
  %515 = vmatpush.msra.mxu0 0.0
  %516 = vmatpush.msra.mxu0 0.0
  %517 = vmatpush.msra.mxu0 0.0
  %518 = vmatpush.msra.mxu0 0.0
  %519 = vmatpush.msra.mxu0 0.0
  %520 = vmatpush.msra.mxu0 0.0
  %521 = vmatpush.msra.mxu0 0.0
  %522 = vmatpush.msra.mxu0 0.0
  %523 = vmatpush.msra.mxu0 0.0
  %524 = vmatpush.msra.mxu0 %v36
  %525 = vmatpush.msra.mxu0 %v35
  %526 = vmatpush.msra.mxu0 %v34
  %527 = vmatpush.msra.mxu0 %v33
  %528 = vmatmul.f32.gmra.mxu0 %v510
  %v529 = vpop.f32.mrf.mxu0
  %v530 = vadd.f32 0.0, %v529
  %531 = vdwg.mxu0
  %v532 = vadd.f32 %v505, %v530
  %537 = vrot.lane.b32.xlu0 %v469, 96
  %v538 = vpop.permute.xlu0 %537
  %539 = vrot.lane.b32.xlu0 %v472, 96
  %v540 = vpop.permute.xlu0 %539
  %541 = vrot.lane.b32.xlu0 %v475, 96
  %v542 = vpop.permute.xlu0 %541
  %543 = vrot.lane.b32.xlu0 %v478, 96
  %v544 = vpop.permute.xlu0 %543
  %v545 = vsel %vm145, %v538, 0
  %v547 = vsel %vm145, %v540, 0
  %v549 = vsel %vm145, %v542, 0
  %v551 = vsel %vm145, %v544, 0
  %553 = vmatpush.msra.mxu0 0.0
  %554 = vmatpush.msra.mxu0 0.0
  %555 = vmatpush.msra.mxu0 0.0
  %556 = vmatpush.msra.mxu0 0.0
  %557 = vmatpush.msra.mxu0 0.0
  %558 = vmatpush.msra.mxu0 0.0
  %559 = vmatpush.msra.mxu0 0.0
  %560 = vmatpush.msra.mxu0 0.0
  %561 = vmatpush.msra.mxu0 0.0
  %562 = vmatpush.msra.mxu0 0.0
  %563 = vmatpush.msra.mxu0 0.0
  %564 = vmatpush.msra.mxu0 0.0
  %565 = vmatpush.msra.mxu0 %v192
  %566 = vmatpush.msra.mxu0 %v190
  %567 = vmatpush.msra.mxu0 %v188
  %568 = vmatpush.msra.mxu0 %v186
  %569 = vmatmul.f32.gmra.mxu0 %v545
  %v570 = vpop.f32.mrf.mxu0
  %v571 = vadd.f32 0.0, %v570
  %572 = vmatmul.f32.gmra.mxu0 %v547
  %v573 = vpop.f32.mrf.mxu0
  %v574 = vadd.f32 0.0, %v573
  %575 = vmatmul.f32.gmra.mxu0 %v549
  %v576 = vpop.f32.mrf.mxu0
  %v577 = vadd.f32 0.0, %v576
  %578 = vmatmul.f32.gmra.mxu0 %v551
  %v579 = vpop.f32.mrf.mxu0
  %v580 = vadd.f32 0.0, %v579
  %581 = vdwg.mxu0
  %583 = vrot.lane.b32.xlu0 %v505, 32
  %v584 = vpop.permute.xlu0 %583
  %v586 = vadd.f32 %v571, %v584
  %v587 = vxor.u32 %v586, 2147483648
  %v588 = vmul.f32 %v587, 1.442695
  %v589 = vpow.pop %v588
  %v590 = vadd.f32 %v589, 1.0
  %v591 = vrcp.pop %v590
  %v592 = vmul.f32 %v590, %v591
  %v593 = vsub.f32 1.0, %v592
  %v594 = vmul.f32 %v591, %v593
  %v595 = vadd.f32 %v591, %v594
  %vm596 = vweird.f32 %v590
  %vm597 = vweird.f32 %v591
  %vm598 = vmor %vm596, %vm597
  %v599 = vsel %vm598, %v591, %v595
  %v600 = vand.u32 2147483647, %v590
  %vm601 = vcmp.eq.f32.partialorder %v600, 8.507059e+37
  %v602 = vand.u32 %v590, 2147483648
  %v603 = vor.u32 1.1754944e-38, %v602
  %v604 = vsel %vm601, %v603, %v599
  %v605 = vmul.f32 1.0, %v604
  %v606 = vmul.f32 %v605, %v469
  %v607 = vadd.f32 %v606, 0.0
  %v608 = vadd.f32 %v574, %v584
  %v609 = vxor.u32 %v608, 2147483648
  %v610 = vmul.f32 %v609, 1.442695
  %v611 = vpow.pop %v610
  %v612 = vadd.f32 %v611, 1.0
  %v613 = vrcp.pop %v612
  %v614 = vmul.f32 %v612, %v613
  %v615 = vsub.f32 1.0, %v614
  %v616 = vmul.f32 %v613, %v615
  %v617 = vadd.f32 %v613, %v616
  %vm618 = vweird.f32 %v612
  %vm619 = vweird.f32 %v613
  %vm620 = vmor %vm618, %vm619
  %v621 = vsel %vm620, %v613, %v617
  %v622 = vand.u32 2147483647, %v612
  %vm623 = vcmp.eq.f32.partialorder %v622, 8.507059e+37
  %v624 = vand.u32 %v612, 2147483648
  %v625 = vor.u32 1.1754944e-38, %v624
  %v626 = vsel %vm623, %v625, %v621
  %v627 = vmul.f32 1.0, %v626
  %v628 = vmul.f32 %v627, %v472
  %v629 = vadd.f32 %v607, %v628
  %v630 = vadd.f32 %v577, %v584
  %v631 = vxor.u32 %v630, 2147483648
  %v632 = vmul.f32 %v631, 1.442695
  %v633 = vpow.pop %v632
  %v634 = vadd.f32 %v633, 1.0
  %v635 = vrcp.pop %v634
  %v636 = vmul.f32 %v634, %v635
  %v637 = vsub.f32 1.0, %v636
  %v638 = vmul.f32 %v635, %v637
  %v639 = vadd.f32 %v635, %v638
  %vm640 = vweird.f32 %v634
  %vm641 = vweird.f32 %v635
  %vm642 = vmor %vm640, %vm641
  %v643 = vsel %vm642, %v635, %v639
  %v644 = vand.u32 2147483647, %v634
  %vm645 = vcmp.eq.f32.partialorder %v644, 8.507059e+37
  %v646 = vand.u32 %v634, 2147483648
  %v647 = vor.u32 1.1754944e-38, %v646
  %v648 = vsel %vm645, %v647, %v643
  %v649 = vmul.f32 1.0, %v648
  %v650 = vmul.f32 %v649, %v475
  %v651 = vadd.f32 %v629, %v650
  %v652 = vadd.f32 %v580, %v584
  %v653 = vxor.u32 %v652, 2147483648
  %v654 = vmul.f32 %v653, 1.442695
  %v655 = vpow.pop %v654
  %v656 = vadd.f32 %v655, 1.0
  %v657 = vrcp.pop %v656
  %v658 = vmul.f32 %v656, %v657
  %v659 = vsub.f32 1.0, %v658
  %v660 = vmul.f32 %v657, %v659
  %v661 = vadd.f32 %v657, %v660
  %vm662 = vweird.f32 %v656
  %vm663 = vweird.f32 %v657
  %vm664 = vmor %vm662, %vm663
  %v665 = vsel %vm664, %v657, %v661
  %v666 = vand.u32 2147483647, %v656
  %vm667 = vcmp.eq.f32.partialorder %v666, 8.507059e+37
  %v668 = vand.u32 %v656, 2147483648
  %v669 = vor.u32 1.1754944e-38, %v668
  %v670 = vsel %vm667, %v669, %v665
  %v671 = vmul.f32 1.0, %v670
  %v672 = vmul.f32 %v671, %v478
  %v673 = vadd.f32 %v651, %v672
  %v674 = vxor.u32 %v532, 2147483648
  %v675 = vmul.f32 %v674, 1.442695
  %v676 = vpow.pop %v675
  %v677 = vadd.f32 %v676, 1.0
  %v678 = vrcp.pop %v677
  %v679 = vmul.f32 %v677, %v678
  %v680 = vsub.f32 1.0, %v679
  %v681 = vmul.f32 %v678, %v680
  %v682 = vadd.f32 %v678, %v681
  %vm683 = vweird.f32 %v677
  %vm684 = vweird.f32 %v678
  %vm685 = vmor %vm683, %vm684
  %v686 = vsel %vm685, %v678, %v682
  %v687 = vand.u32 2147483647, %v677
  %vm688 = vcmp.eq.f32.partialorder %v687, 8.507059e+37
  %v689 = vand.u32 %v677, 2147483648
  %v690 = vor.u32 1.1754944e-38, %v689
  %v691 = vsel %vm688, %v690, %v686
  %v692 = vmul.f32 1.0, %v691
  %v693 = vtanh.pop %v532
  %695 = vrot.lane.b32.xlu0 %v693, 64
  %v696 = vpop.permute.xlu0 %695
  %v698 = vmul.f32 %v692, %v696
  %v699 = vadd.f32 %v698, %v673
  %v700 = vtanh.pop %v699
  %702 = vrot.lane.b32.xlu0 %v700, 32
  %v703 = vpop.permute.xlu0 %702
  %v705 = vmul.f32 %v692, %v703
  %v706 = vsel %vm145, %v699, %v705
  %v708 = vsel %vm359, %v411, 0
  %v711 = vsel %vm359, %v412, 0
  %713 = vmatpush.msra.mxu0 0.0
  %714 = vmatpush.msra.mxu0 0.0
  %715 = vmatpush.msra.mxu0 0.0
  %716 = vmatpush.msra.mxu0 0.0
  %717 = vmatpush.msra.mxu0 0.0
  %718 = vmatpush.msra.mxu0 0.0
  %719 = vmatpush.msra.mxu0 0.0
  %720 = vmatpush.msra.mxu0 0.0
  %721 = vmatpush.msra.mxu0 0.0
  %722 = vmatpush.msra.mxu0 0.0
  %723 = vmatpush.msra.mxu0 0.0
  %724 = vmatpush.msra.mxu0 0.0
  %725 = vmatpush.msra.mxu0 0.0
  %726 = vmatpush.msra.mxu0 0.0
  %727 = vmatpush.msra.mxu0 0.0
  %728 = vmatpush.msra.mxu0 %v706
  %729 = vmatmul.f32.gmra.mxu0 %v708
  %v730 = vpop.f32.mrf.mxu0
  %v731 = vadd.f32 0.0, %v730
  %732 = vmatmul.f32.gmra.mxu0 %v711
  %v733 = vpop.f32.mrf.mxu0
  %v734 = vadd.f32 0.0, %v733
  %735 = vdwg.mxu0
  %vm736 = vcmp.gt.f32.partialorder %v414, 0.0
  %vm737 = vcmp.gt.f32.partialorder %v415, 0.0
  %v738 = vsel %vm736, 1, 0
  %v739 = vsel %vm737, 1, 0
  %740 = vset.pattern.permute.xlu0 0
  %741 = vperm.xlu0 %740, %v738
  %v742 = vpop.permute.xlu0 %741
  %743 = vset.pattern.permute.xlu0 0
  %744 = vperm.xlu0 %743, %v739
  %v745 = vpop.permute.xlu0 %744
  %vm746 = vcmp.eq.s32.totalorder %v742, 1
  %vm747 = vcmp.eq.s32.totalorder %v745, 1
  %v748 = vsel %vm746, %v731, %v401
  %v749 = vsel %vm747, %v734, %v402
  %s750 = scalar_lea.vmem %s0, 16
  %v751 = vld [vmem:[%s750] sm:$0xff]
  %s752 = scalar_lea.vmem %s1, 64
  %v753 = vld [vmem:[%s752] sm:$0xff]
  %v754 = vld [vmem:[%s752 + $0x8] sm:$0xff]
  %v755 = vld [vmem:[%s752 + $0x10] sm:$0xff]
  %v756 = vld [vmem:[%s752 + $0x18] sm:$0xff]
  %s757 = scalar_lea.vmem %s2, 32
  %v758 = vld [vmem:[%s757] sm:$0xff]
  %v759 = vld [vmem:[%s757 + $0x8] sm:$0xff]
  %s760 = scalar_lea.vmem %s3, 32
  %v761 = vld [vmem:[%s760] sm:$0xff]
  %v762 = vld [vmem:[%s760 + $0x8] sm:$0xff]
  %v764 = vsel %vm47, %v751, 0
  %766 = vmatpush.msra.mxu0 0.0
  %767 = vmatpush.msra.mxu0 0.0
  %768 = vmatpush.msra.mxu0 0.0
  %769 = vmatpush.msra.mxu0 0.0
  %770 = vmatpush.msra.mxu0 0.0
  %771 = vmatpush.msra.mxu0 0.0
  %772 = vmatpush.msra.mxu0 0.0
  %773 = vmatpush.msra.mxu0 0.0
  %774 = vmatpush.msra.mxu0 0.0
  %775 = vmatpush.msra.mxu0 0.0
  %776 = vmatpush.msra.mxu0 0.0
  %777 = vmatpush.msra.mxu0 0.0
  %778 = vmatpush.msra.mxu0 0.0
  %779 = vmatpush.msra.mxu0 0.0
  %780 = vmatpush.msra.mxu0 %v30
  %781 = vmatpush.msra.mxu0 %v29
  %782 = vmatmul.f32.gmra.mxu0 %v764
  %v783 = vpop.f32.mrf.mxu0
  %v784 = vadd.f32 0.0, %v783
  %785 = vdwg.mxu0
  %v787 = vsel %vm47, %v753, 0
  %v790 = vsel %vm47, %v754, 0
  %v793 = vsel %vm47, %v755, 0
  %v796 = vsel %vm47, %v756, 0
  %798 = vmatpush.msra.mxu0 0.0
  %799 = vmatpush.msra.mxu0 0.0
  %800 = vmatpush.msra.mxu0 0.0
  %801 = vmatpush.msra.mxu0 0.0
  %802 = vmatpush.msra.mxu0 0.0
  %803 = vmatpush.msra.mxu0 0.0
  %804 = vmatpush.msra.mxu0 0.0
  %805 = vmatpush.msra.mxu0 0.0
  %806 = vmatpush.msra.mxu0 0.0
  %807 = vmatpush.msra.mxu0 0.0
  %808 = vmatpush.msra.mxu0 0.0
  %809 = vmatpush.msra.mxu0 0.0
  %810 = vmatpush.msra.mxu0 0.0
  %811 = vmatpush.msra.mxu0 0.0
  %812 = vmatpush.msra.mxu0 %v749
  %813 = vmatpush.msra.mxu0 %v748
  %814 = vmatmul.f32.gmra.mxu0 %v787
  %v815 = vpop.f32.mrf.mxu0
  %v816 = vadd.f32 0.0, %v815
  %817 = vmatmul.f32.gmra.mxu0 %v790
  %v818 = vpop.f32.mrf.mxu0
  %v819 = vadd.f32 0.0, %v818
  %820 = vmatmul.f32.gmra.mxu0 %v793
  %v821 = vpop.f32.mrf.mxu0
  %v822 = vadd.f32 0.0, %v821
  %823 = vmatmul.f32.gmra.mxu0 %v796
  %v824 = vpop.f32.mrf.mxu0
  %v825 = vadd.f32 0.0, %v824
  %826 = vdwg.mxu0
  %v827 = vadd.f32 %v816, 0.0
  %v828 = vadd.f32 %v827, %v819
  %v829 = vadd.f32 %v828, %v822
  %v830 = vadd.f32 %v829, %v825
  %v832 = vsel %vm47, %v784, 0
  %834 = vmatpush.msra.mxu0 0.0
  %835 = vmatpush.msra.mxu0 0.0
  %836 = vmatpush.msra.mxu0 0.0
  %837 = vmatpush.msra.mxu0 0.0
  %838 = vmatpush.msra.mxu0 0.0
  %839 = vmatpush.msra.mxu0 0.0
  %840 = vmatpush.msra.mxu0 0.0
  %841 = vmatpush.msra.mxu0 0.0
  %842 = vmatpush.msra.mxu0 0.0
  %843 = vmatpush.msra.mxu0 0.0
  %844 = vmatpush.msra.mxu0 0.0
  %845 = vmatpush.msra.mxu0 0.0
  %846 = vmatpush.msra.mxu0 0.0
  %847 = vmatpush.msra.mxu0 0.0
  %848 = vmatpush.msra.mxu0 %v32
  %849 = vmatpush.msra.mxu0 %v31
  %850 = vmatmul.f32.gmra.mxu0 %v832
  %v851 = vpop.f32.mrf.mxu0
  %v852 = vadd.f32 %v117, %v851
  %853 = vdwg.mxu0
  %855 = vrot.lane.b32.xlu0 %v830, 96
  %v856 = vpop.permute.xlu0 %855
  %v857 = vsel %vm145, %v856, 0
  %859 = vmatpush.msra.mxu0 0.0
  %860 = vmatpush.msra.mxu0 0.0
  %861 = vmatpush.msra.mxu0 0.0
  %862 = vmatpush.msra.mxu0 0.0
  %863 = vmatpush.msra.mxu0 0.0
  %864 = vmatpush.msra.mxu0 0.0
  %865 = vmatpush.msra.mxu0 0.0
  %866 = vmatpush.msra.mxu0 0.0
  %867 = vmatpush.msra.mxu0 0.0
  %868 = vmatpush.msra.mxu0 0.0
  %869 = vmatpush.msra.mxu0 0.0
  %870 = vmatpush.msra.mxu0 0.0
  %871 = vmatpush.msra.mxu0 %v36
  %872 = vmatpush.msra.mxu0 %v35
  %873 = vmatpush.msra.mxu0 %v34
  %874 = vmatpush.msra.mxu0 %v33
  %875 = vmatmul.f32.gmra.mxu0 %v857
  %v876 = vpop.f32.mrf.mxu0
  %v877 = vadd.f32 0.0, %v876
  %878 = vdwg.mxu0
  %v879 = vadd.f32 %v852, %v877
  %884 = vrot.lane.b32.xlu0 %v816, 96
  %v885 = vpop.permute.xlu0 %884
  %886 = vrot.lane.b32.xlu0 %v819, 96
  %v887 = vpop.permute.xlu0 %886
  %888 = vrot.lane.b32.xlu0 %v822, 96
  %v889 = vpop.permute.xlu0 %888
  %890 = vrot.lane.b32.xlu0 %v825, 96
  %v891 = vpop.permute.xlu0 %890
  %v892 = vsel %vm145, %v885, 0
  %v894 = vsel %vm145, %v887, 0
  %v896 = vsel %vm145, %v889, 0
  %v898 = vsel %vm145, %v891, 0
  %900 = vmatpush.msra.mxu0 0.0
  %901 = vmatpush.msra.mxu0 0.0
  %902 = vmatpush.msra.mxu0 0.0
  %903 = vmatpush.msra.mxu0 0.0
  %904 = vmatpush.msra.mxu0 0.0
  %905 = vmatpush.msra.mxu0 0.0
  %906 = vmatpush.msra.mxu0 0.0
  %907 = vmatpush.msra.mxu0 0.0
  %908 = vmatpush.msra.mxu0 0.0
  %909 = vmatpush.msra.mxu0 0.0
  %910 = vmatpush.msra.mxu0 0.0
  %911 = vmatpush.msra.mxu0 0.0
  %912 = vmatpush.msra.mxu0 %v192
  %913 = vmatpush.msra.mxu0 %v190
  %914 = vmatpush.msra.mxu0 %v188
  %915 = vmatpush.msra.mxu0 %v186
  %916 = vmatmul.f32.gmra.mxu0 %v892
  %v917 = vpop.f32.mrf.mxu0
  %v918 = vadd.f32 0.0, %v917
  %919 = vmatmul.f32.gmra.mxu0 %v894
  %v920 = vpop.f32.mrf.mxu0
  %v921 = vadd.f32 0.0, %v920
  %922 = vmatmul.f32.gmra.mxu0 %v896
  %v923 = vpop.f32.mrf.mxu0
  %v924 = vadd.f32 0.0, %v923
  %925 = vmatmul.f32.gmra.mxu0 %v898
  %v926 = vpop.f32.mrf.mxu0
  %v927 = vadd.f32 0.0, %v926
  %928 = vdwg.mxu0
  %930 = vrot.lane.b32.xlu0 %v852, 32
  %v931 = vpop.permute.xlu0 %930
  %v933 = vadd.f32 %v918, %v931
  %v934 = vxor.u32 %v933, 2147483648
  %v935 = vmul.f32 %v934, 1.442695
  %v936 = vpow.pop %v935
  %v937 = vadd.f32 %v936, 1.0
  %v938 = vrcp.pop %v937
  %v939 = vmul.f32 %v937, %v938
  %v940 = vsub.f32 1.0, %v939
  %v941 = vmul.f32 %v938, %v940
  %v942 = vadd.f32 %v938, %v941
  %vm943 = vweird.f32 %v937
  %vm944 = vweird.f32 %v938
  %vm945 = vmor %vm943, %vm944
  %v946 = vsel %vm945, %v938, %v942
  %v947 = vand.u32 2147483647, %v937
  %vm948 = vcmp.eq.f32.partialorder %v947, 8.507059e+37
  %v949 = vand.u32 %v937, 2147483648
  %v950 = vor.u32 1.1754944e-38, %v949
  %v951 = vsel %vm948, %v950, %v946
  %v952 = vmul.f32 1.0, %v951
  %v953 = vmul.f32 %v952, %v816
  %v954 = vadd.f32 %v953, 0.0
  %v955 = vadd.f32 %v921, %v931
  %v956 = vxor.u32 %v955, 2147483648
  %v957 = vmul.f32 %v956, 1.442695
  %v958 = vpow.pop %v957
  %v959 = vadd.f32 %v958, 1.0
  %v960 = vrcp.pop %v959
  %v961 = vmul.f32 %v959, %v960
  %v962 = vsub.f32 1.0, %v961
  %v963 = vmul.f32 %v960, %v962
  %v964 = vadd.f32 %v960, %v963
  %vm965 = vweird.f32 %v959
  %vm966 = vweird.f32 %v960
  %vm967 = vmor %vm965, %vm966
  %v968 = vsel %vm967, %v960, %v964
  %v969 = vand.u32 2147483647, %v959
  %vm970 = vcmp.eq.f32.partialorder %v969, 8.507059e+37
  %v971 = vand.u32 %v959, 2147483648
  %v972 = vor.u32 1.1754944e-38, %v971
  %v973 = vsel %vm970, %v972, %v968
  %v974 = vmul.f32 1.0, %v973
  %v975 = vmul.f32 %v974, %v819
  %v976 = vadd.f32 %v954, %v975
  %v977 = vadd.f32 %v924, %v931
  %v978 = vxor.u32 %v977, 2147483648
  %v979 = vmul.f32 %v978, 1.442695
  %v980 = vpow.pop %v979
  %v981 = vadd.f32 %v980, 1.0
  %v982 = vrcp.pop %v981
  %v983 = vmul.f32 %v981, %v982
  %v984 = vsub.f32 1.0, %v983
  %v985 = vmul.f32 %v982, %v984
  %v986 = vadd.f32 %v982, %v985
  %vm987 = vweird.f32 %v981
  %vm988 = vweird.f32 %v982
  %vm989 = vmor %vm987, %vm988
  %v990 = vsel %vm989, %v982, %v986
  %v991 = vand.u32 2147483647, %v981
  %vm992 = vcmp.eq.f32.partialorder %v991, 8.507059e+37
  %v993 = vand.u32 %v981, 2147483648
  %v994 = vor.u32 1.1754944e-38, %v993
  %v995 = vsel %vm992, %v994, %v990
  %v996 = vmul.f32 1.0, %v995
  %v997 = vmul.f32 %v996, %v822
  %v998 = vadd.f32 %v976, %v997
  %v999 = vadd.f32 %v927, %v931
  %v1000 = vxor.u32 %v999, 2147483648
  %v1001 = vmul.f32 %v1000, 1.442695
  %v1002 = vpow.pop %v1001
  %v1003 = vadd.f32 %v1002, 1.0
  %v1004 = vrcp.pop %v1003
  %v1005 = vmul.f32 %v1003, %v1004
  %v1006 = vsub.f32 1.0, %v1005
  %v1007 = vmul.f32 %v1004, %v1006
  %v1008 = vadd.f32 %v1004, %v1007
  %vm1009 = vweird.f32 %v1003
  %vm1010 = vweird.f32 %v1004
  %vm1011 = vmor %vm1009, %vm1010
  %v1012 = vsel %vm1011, %v1004, %v1008
  %v1013 = vand.u32 2147483647, %v1003
  %vm1014 = vcmp.eq.f32.partialorder %v1013, 8.507059e+37
  %v1015 = vand.u32 %v1003, 2147483648
  %v1016 = vor.u32 1.1754944e-38, %v1015
  %v1017 = vsel %vm1014, %v1016, %v1012
  %v1018 = vmul.f32 1.0, %v1017
  %v1019 = vmul.f32 %v1018, %v825
  %v1020 = vadd.f32 %v998, %v1019
  %v1021 = vxor.u32 %v879, 2147483648
  %v1022 = vmul.f32 %v1021, 1.442695
  %v1023 = vpow.pop %v1022
  %v1024 = vadd.f32 %v1023, 1.0
  %v1025 = vrcp.pop %v1024
  %v1026 = vmul.f32 %v1024, %v1025
  %v1027 = vsub.f32 1.0, %v1026
  %v1028 = vmul.f32 %v1025, %v1027
  %v1029 = vadd.f32 %v1025, %v1028
  %vm1030 = vweird.f32 %v1024
  %vm1031 = vweird.f32 %v1025
  %vm1032 = vmor %vm1030, %vm1031
  %v1033 = vsel %vm1032, %v1025, %v1029
  %v1034 = vand.u32 2147483647, %v1024
  %vm1035 = vcmp.eq.f32.partialorder %v1034, 8.507059e+37
  %v1036 = vand.u32 %v1024, 2147483648
  %v1037 = vor.u32 1.1754944e-38, %v1036
  %v1038 = vsel %vm1035, %v1037, %v1033
  %v1039 = vmul.f32 1.0, %v1038
  %v1040 = vtanh.pop %v879
  %1042 = vrot.lane.b32.xlu0 %v1040, 64
  %v1043 = vpop.permute.xlu0 %1042
  %v1045 = vmul.f32 %v1039, %v1043
  %v1046 = vadd.f32 %v1045, %v1020
  %v1047 = vtanh.pop %v1046
  %1049 = vrot.lane.b32.xlu0 %v1047, 32
  %v1050 = vpop.permute.xlu0 %1049
  %v1052 = vmul.f32 %v1039, %v1050
  %v1053 = vsel %vm145, %v1046, %v1052
  %v1055 = vsel %vm359, %v758, 0
  %v1058 = vsel %vm359, %v759, 0
  %1060 = vmatpush.msra.mxu0 0.0
  %1061 = vmatpush.msra.mxu0 0.0
  %1062 = vmatpush.msra.mxu0 0.0
  %1063 = vmatpush.msra.mxu0 0.0
  %1064 = vmatpush.msra.mxu0 0.0
  %1065 = vmatpush.msra.mxu0 0.0
  %1066 = vmatpush.msra.mxu0 0.0
  %1067 = vmatpush.msra.mxu0 0.0
  %1068 = vmatpush.msra.mxu0 0.0
  %1069 = vmatpush.msra.mxu0 0.0
  %1070 = vmatpush.msra.mxu0 0.0
  %1071 = vmatpush.msra.mxu0 0.0
  %1072 = vmatpush.msra.mxu0 0.0
  %1073 = vmatpush.msra.mxu0 0.0
  %1074 = vmatpush.msra.mxu0 0.0
  %1075 = vmatpush.msra.mxu0 %v1053
  %1076 = vmatmul.f32.gmra.mxu0 %v1055
  %v1077 = vpop.f32.mrf.mxu0
  %v1078 = vadd.f32 0.0, %v1077
  %1079 = vmatmul.f32.gmra.mxu0 %v1058
  %v1080 = vpop.f32.mrf.mxu0
  %v1081 = vadd.f32 0.0, %v1080
  %1082 = vdwg.mxu0
  %vm1083 = vcmp.gt.f32.partialorder %v761, 0.0
  %vm1084 = vcmp.gt.f32.partialorder %v762, 0.0
  %v1085 = vsel %vm1083, 1, 0
  %v1086 = vsel %vm1084, 1, 0
  %1087 = vset.pattern.permute.xlu0 0
  %1088 = vperm.xlu0 %1087, %v1085
  %v1089 = vpop.permute.xlu0 %1088
  %1090 = vset.pattern.permute.xlu0 0
  %1091 = vperm.xlu0 %1090, %v1086
  %v1092 = vpop.permute.xlu0 %1091
  %vm1093 = vcmp.eq.s32.totalorder %v1089, 1
  %vm1094 = vcmp.eq.s32.totalorder %v1092, 1
  %v1095 = vsel %vm1093, %v1078, %v748
  %v1096 = vsel %vm1094, %v1081, %v749
  %s1097 = scalar_lea.vmem %s0, 24
  %v1098 = vld [vmem:[%s1097] sm:$0xff]
  %s1099 = scalar_lea.vmem %s1, 96
  %v1100 = vld [vmem:[%s1099] sm:$0xff]
  %v1101 = vld [vmem:[%s1099 + $0x8] sm:$0xff]
  %v1102 = vld [vmem:[%s1099 + $0x10] sm:$0xff]
  %v1103 = vld [vmem:[%s1099 + $0x18] sm:$0xff]
  %s1104 = scalar_lea.vmem %s2, 48
  %v1105 = vld [vmem:[%s1104] sm:$0xff]
  %v1106 = vld [vmem:[%s1104 + $0x8] sm:$0xff]
  %s1107 = scalar_lea.vmem %s3, 48
  %v1108 = vld [vmem:[%s1107] sm:$0xff]
  %v1109 = vld [vmem:[%s1107 + $0x8] sm:$0xff]
  %v1111 = vsel %vm47, %v1098, 0
  %1113 = vmatpush.msra.mxu0 0.0
  %1114 = vmatpush.msra.mxu0 0.0
  %1115 = vmatpush.msra.mxu0 0.0
  %1116 = vmatpush.msra.mxu0 0.0
  %1117 = vmatpush.msra.mxu0 0.0
  %1118 = vmatpush.msra.mxu0 0.0
  %1119 = vmatpush.msra.mxu0 0.0
  %1120 = vmatpush.msra.mxu0 0.0
  %1121 = vmatpush.msra.mxu0 0.0
  %1122 = vmatpush.msra.mxu0 0.0
  %1123 = vmatpush.msra.mxu0 0.0
  %1124 = vmatpush.msra.mxu0 0.0
  %1125 = vmatpush.msra.mxu0 0.0
  %1126 = vmatpush.msra.mxu0 0.0
  %1127 = vmatpush.msra.mxu0 %v30
  %1128 = vmatpush.msra.mxu0 %v29
  %1129 = vmatmul.f32.gmra.mxu0 %v1111
  %v1130 = vpop.f32.mrf.mxu0
  %v1131 = vadd.f32 0.0, %v1130
  %1132 = vdwg.mxu0
  %v1134 = vsel %vm47, %v1100, 0
  %v1137 = vsel %vm47, %v1101, 0
  %v1140 = vsel %vm47, %v1102, 0
  %v1143 = vsel %vm47, %v1103, 0
  %1145 = vmatpush.msra.mxu0 0.0
  %1146 = vmatpush.msra.mxu0 0.0
  %1147 = vmatpush.msra.mxu0 0.0
  %1148 = vmatpush.msra.mxu0 0.0
  %1149 = vmatpush.msra.mxu0 0.0
  %1150 = vmatpush.msra.mxu0 0.0
  %1151 = vmatpush.msra.mxu0 0.0
  %1152 = vmatpush.msra.mxu0 0.0
  %1153 = vmatpush.msra.mxu0 0.0
  %1154 = vmatpush.msra.mxu0 0.0
  %1155 = vmatpush.msra.mxu0 0.0
  %1156 = vmatpush.msra.mxu0 0.0
  %1157 = vmatpush.msra.mxu0 0.0
  %1158 = vmatpush.msra.mxu0 0.0
  %1159 = vmatpush.msra.mxu0 %v1096
  %1160 = vmatpush.msra.mxu0 %v1095
  %1161 = vmatmul.f32.gmra.mxu0 %v1134
  %v1162 = vpop.f32.mrf.mxu0
  %v1163 = vadd.f32 0.0, %v1162
  %1164 = vmatmul.f32.gmra.mxu0 %v1137
  %v1165 = vpop.f32.mrf.mxu0
  %v1166 = vadd.f32 0.0, %v1165
  %1167 = vmatmul.f32.gmra.mxu0 %v1140
  %v1168 = vpop.f32.mrf.mxu0
  %v1169 = vadd.f32 0.0, %v1168
  %1170 = vmatmul.f32.gmra.mxu0 %v1143
  %v1171 = vpop.f32.mrf.mxu0
  %v1172 = vadd.f32 0.0, %v1171
  %1173 = vdwg.mxu0
  %v1174 = vadd.f32 %v1163, 0.0
  %v1175 = vadd.f32 %v1174, %v1166
  %v1176 = vadd.f32 %v1175, %v1169
  %v1177 = vadd.f32 %v1176, %v1172
  %v1179 = vsel %vm47, %v1131, 0
  %1181 = vmatpush.msra.mxu0 0.0
  %1182 = vmatpush.msra.mxu0 0.0
  %1183 = vmatpush.msra.mxu0 0.0
  %1184 = vmatpush.msra.mxu0 0.0
  %1185 = vmatpush.msra.mxu0 0.0
  %1186 = vmatpush.msra.mxu0 0.0
  %1187 = vmatpush.msra.mxu0 0.0
  %1188 = vmatpush.msra.mxu0 0.0
  %1189 = vmatpush.msra.mxu0 0.0
  %1190 = vmatpush.msra.mxu0 0.0
  %1191 = vmatpush.msra.mxu0 0.0
  %1192 = vmatpush.msra.mxu0 0.0
  %1193 = vmatpush.msra.mxu0 0.0
  %1194 = vmatpush.msra.mxu0 0.0
  %1195 = vmatpush.msra.mxu0 %v32
  %1196 = vmatpush.msra.mxu0 %v31
  %1197 = vmatmul.f32.gmra.mxu0 %v1179
  %v1198 = vpop.f32.mrf.mxu0
  %v1199 = vadd.f32 %v117, %v1198
  %1200 = vdwg.mxu0
  %1202 = vrot.lane.b32.xlu0 %v1177, 96
  %v1203 = vpop.permute.xlu0 %1202
  %v1204 = vsel %vm145, %v1203, 0
  %1206 = vmatpush.msra.mxu0 0.0
  %1207 = vmatpush.msra.mxu0 0.0
  %1208 = vmatpush.msra.mxu0 0.0
  %1209 = vmatpush.msra.mxu0 0.0
  %1210 = vmatpush.msra.mxu0 0.0
  %1211 = vmatpush.msra.mxu0 0.0
  %1212 = vmatpush.msra.mxu0 0.0
  %1213 = vmatpush.msra.mxu0 0.0
  %1214 = vmatpush.msra.mxu0 0.0
  %1215 = vmatpush.msra.mxu0 0.0
  %1216 = vmatpush.msra.mxu0 0.0
  %1217 = vmatpush.msra.mxu0 0.0
  %1218 = vmatpush.msra.mxu0 %v36
  %1219 = vmatpush.msra.mxu0 %v35
  %1220 = vmatpush.msra.mxu0 %v34
  %1221 = vmatpush.msra.mxu0 %v33
  %1222 = vmatmul.f32.gmra.mxu0 %v1204
  %v1223 = vpop.f32.mrf.mxu0
  %v1224 = vadd.f32 0.0, %v1223
  %1225 = vdwg.mxu0
  %v1226 = vadd.f32 %v1199, %v1224
  %1231 = vrot.lane.b32.xlu0 %v1163, 96
  %v1232 = vpop.permute.xlu0 %1231
  %1233 = vrot.lane.b32.xlu0 %v1166, 96
  %v1234 = vpop.permute.xlu0 %1233
  %1235 = vrot.lane.b32.xlu0 %v1169, 96
  %v1236 = vpop.permute.xlu0 %1235
  %1237 = vrot.lane.b32.xlu0 %v1172, 96
  %v1238 = vpop.permute.xlu0 %1237
  %v1239 = vsel %vm145, %v1232, 0
  %v1241 = vsel %vm145, %v1234, 0
  %v1243 = vsel %vm145, %v1236, 0
  %v1245 = vsel %vm145, %v1238, 0
  %1247 = vmatpush.msra.mxu0 0.0
  %1248 = vmatpush.msra.mxu0 0.0
  %1249 = vmatpush.msra.mxu0 0.0
  %1250 = vmatpush.msra.mxu0 0.0
  %1251 = vmatpush.msra.mxu0 0.0
  %1252 = vmatpush.msra.mxu0 0.0
  %1253 = vmatpush.msra.mxu0 0.0
  %1254 = vmatpush.msra.mxu0 0.0
  %1255 = vmatpush.msra.mxu0 0.0
  %1256 = vmatpush.msra.mxu0 0.0
  %1257 = vmatpush.msra.mxu0 0.0
  %1258 = vmatpush.msra.mxu0 0.0
  %1259 = vmatpush.msra.mxu0 %v192
  %1260 = vmatpush.msra.mxu0 %v190
  %1261 = vmatpush.msra.mxu0 %v188
  %1262 = vmatpush.msra.mxu0 %v186
  %1263 = vmatmul.f32.gmra.mxu0 %v1239
  %v1264 = vpop.f32.mrf.mxu0
  %v1265 = vadd.f32 0.0, %v1264
  %1266 = vmatmul.f32.gmra.mxu0 %v1241
  %v1267 = vpop.f32.mrf.mxu0
  %v1268 = vadd.f32 0.0, %v1267
  %1269 = vmatmul.f32.gmra.mxu0 %v1243
  %v1270 = vpop.f32.mrf.mxu0
  %v1271 = vadd.f32 0.0, %v1270
  %1272 = vmatmul.f32.gmra.mxu0 %v1245
  %v1273 = vpop.f32.mrf.mxu0
  %v1274 = vadd.f32 0.0, %v1273
  %1275 = vdwg.mxu0
  %1277 = vrot.lane.b32.xlu0 %v1199, 32
  %v1278 = vpop.permute.xlu0 %1277
  %v1280 = vadd.f32 %v1265, %v1278
  %v1281 = vxor.u32 %v1280, 2147483648
  %v1282 = vmul.f32 %v1281, 1.442695
  %v1283 = vpow.pop %v1282
  %v1284 = vadd.f32 %v1283, 1.0
  %v1285 = vrcp.pop %v1284
  %v1286 = vmul.f32 %v1284, %v1285
  %v1287 = vsub.f32 1.0, %v1286
  %v1288 = vmul.f32 %v1285, %v1287
  %v1289 = vadd.f32 %v1285, %v1288
  %vm1290 = vweird.f32 %v1284
  %vm1291 = vweird.f32 %v1285
  %vm1292 = vmor %vm1290, %vm1291
  %v1293 = vsel %vm1292, %v1285, %v1289
  %v1294 = vand.u32 2147483647, %v1284
  %vm1295 = vcmp.eq.f32.partialorder %v1294, 8.507059e+37
  %v1296 = vand.u32 %v1284, 2147483648
  %v1297 = vor.u32 1.1754944e-38, %v1296
  %v1298 = vsel %vm1295, %v1297, %v1293
  %v1299 = vmul.f32 1.0, %v1298
  %v1300 = vmul.f32 %v1299, %v1163
  %v1301 = vadd.f32 %v1300, 0.0
  %v1302 = vadd.f32 %v1268, %v1278
  %v1303 = vxor.u32 %v1302, 2147483648
  %v1304 = vmul.f32 %v1303, 1.442695
  %v1305 = vpow.pop %v1304
  %v1306 = vadd.f32 %v1305, 1.0
  %v1307 = vrcp.pop %v1306
  %v1308 = vmul.f32 %v1306, %v1307
  %v1309 = vsub.f32 1.0, %v1308
  %v1310 = vmul.f32 %v1307, %v1309
  %v1311 = vadd.f32 %v1307, %v1310
  %vm1312 = vweird.f32 %v1306
  %vm1313 = vweird.f32 %v1307
  %vm1314 = vmor %vm1312, %vm1313
  %v1315 = vsel %vm1314, %v1307, %v1311
  %v1316 = vand.u32 2147483647, %v1306
  %vm1317 = vcmp.eq.f32.partialorder %v1316, 8.507059e+37
  %v1318 = vand.u32 %v1306, 2147483648
  %v1319 = vor.u32 1.1754944e-38, %v1318
  %v1320 = vsel %vm1317, %v1319, %v1315
  %v1321 = vmul.f32 1.0, %v1320
  %v1322 = vmul.f32 %v1321, %v1166
  %v1323 = vadd.f32 %v1301, %v1322
  %v1324 = vadd.f32 %v1271, %v1278
  %v1325 = vxor.u32 %v1324, 2147483648
  %v1326 = vmul.f32 %v1325, 1.442695
  %v1327 = vpow.pop %v1326
  %v1328 = vadd.f32 %v1327, 1.0
  %v1329 = vrcp.pop %v1328
  %v1330 = vmul.f32 %v1328, %v1329
  %v1331 = vsub.f32 1.0, %v1330
  %v1332 = vmul.f32 %v1329, %v1331
  %v1333 = vadd.f32 %v1329, %v1332
  %vm1334 = vweird.f32 %v1328
  %vm1335 = vweird.f32 %v1329
  %vm1336 = vmor %vm1334, %vm1335
  %v1337 = vsel %vm1336, %v1329, %v1333
  %v1338 = vand.u32 2147483647, %v1328
  %vm1339 = vcmp.eq.f32.partialorder %v1338, 8.507059e+37
  %v1340 = vand.u32 %v1328, 2147483648
  %v1341 = vor.u32 1.1754944e-38, %v1340
  %v1342 = vsel %vm1339, %v1341, %v1337
  %v1343 = vmul.f32 1.0, %v1342
  %v1344 = vmul.f32 %v1343, %v1169
  %v1345 = vadd.f32 %v1323, %v1344
  %v1346 = vadd.f32 %v1274, %v1278
  %v1347 = vxor.u32 %v1346, 2147483648
  %v1348 = vmul.f32 %v1347, 1.442695
  %v1349 = vpow.pop %v1348
  %v1350 = vadd.f32 %v1349, 1.0
  %v1351 = vrcp.pop %v1350
  %v1352 = vmul.f32 %v1350, %v1351
  %v1353 = vsub.f32 1.0, %v1352
  %v1354 = vmul.f32 %v1351, %v1353
  %v1355 = vadd.f32 %v1351, %v1354
  %vm1356 = vweird.f32 %v1350
  %vm1357 = vweird.f32 %v1351
  %vm1358 = vmor %vm1356, %vm1357
  %v1359 = vsel %vm1358, %v1351, %v1355
  %v1360 = vand.u32 2147483647, %v1350
  %vm1361 = vcmp.eq.f32.partialorder %v1360, 8.507059e+37
  %v1362 = vand.u32 %v1350, 2147483648
  %v1363 = vor.u32 1.1754944e-38, %v1362
  %v1364 = vsel %vm1361, %v1363, %v1359
  %v1365 = vmul.f32 1.0, %v1364
  %v1366 = vmul.f32 %v1365, %v1172
  %v1367 = vadd.f32 %v1345, %v1366
  %v1368 = vxor.u32 %v1226, 2147483648
  %v1369 = vmul.f32 %v1368, 1.442695
  %v1370 = vpow.pop %v1369
  %v1371 = vadd.f32 %v1370, 1.0
  %v1372 = vrcp.pop %v1371
  %v1373 = vmul.f32 %v1371, %v1372
  %v1374 = vsub.f32 1.0, %v1373
  %v1375 = vmul.f32 %v1372, %v1374
  %v1376 = vadd.f32 %v1372, %v1375
  %vm1377 = vweird.f32 %v1371
  %vm1378 = vweird.f32 %v1372
  %vm1379 = vmor %vm1377, %vm1378
  %v1380 = vsel %vm1379, %v1372, %v1376
  %v1381 = vand.u32 2147483647, %v1371
  %vm1382 = vcmp.eq.f32.partialorder %v1381, 8.507059e+37
  %v1383 = vand.u32 %v1371, 2147483648
  %v1384 = vor.u32 1.1754944e-38, %v1383
  %v1385 = vsel %vm1382, %v1384, %v1380
  %v1386 = vmul.f32 1.0, %v1385
  %v1387 = vtanh.pop %v1226
  %1389 = vrot.lane.b32.xlu0 %v1387, 64
  %v1390 = vpop.permute.xlu0 %1389
  %v1392 = vmul.f32 %v1386, %v1390
  %v1393 = vadd.f32 %v1392, %v1367
  %v1394 = vtanh.pop %v1393
  %1396 = vrot.lane.b32.xlu0 %v1394, 32
  %v1397 = vpop.permute.xlu0 %1396
  %v1399 = vmul.f32 %v1386, %v1397
  %v1400 = vsel %vm145, %v1393, %v1399
  %v1402 = vsel %vm359, %v1105, 0
  %v1405 = vsel %vm359, %v1106, 0
  %1407 = vmatpush.msra.mxu0 0.0
  %1408 = vmatpush.msra.mxu0 0.0
  %1409 = vmatpush.msra.mxu0 0.0
  %1410 = vmatpush.msra.mxu0 0.0
  %1411 = vmatpush.msra.mxu0 0.0
  %1412 = vmatpush.msra.mxu0 0.0
  %1413 = vmatpush.msra.mxu0 0.0
  %1414 = vmatpush.msra.mxu0 0.0
  %1415 = vmatpush.msra.mxu0 0.0
  %1416 = vmatpush.msra.mxu0 0.0
  %1417 = vmatpush.msra.mxu0 0.0
  %1418 = vmatpush.msra.mxu0 0.0
  %1419 = vmatpush.msra.mxu0 0.0
  %1420 = vmatpush.msra.mxu0 0.0
  %1421 = vmatpush.msra.mxu0 0.0
  %1422 = vmatpush.msra.mxu0 %v1400
  %1423 = vmatmul.f32.gmra.mxu0 %v1402
  %v1424 = vpop.f32.mrf.mxu0
  %v1425 = vadd.f32 0.0, %v1424
  %1426 = vmatmul.f32.gmra.mxu0 %v1405
  %v1427 = vpop.f32.mrf.mxu0
  %v1428 = vadd.f32 0.0, %v1427
  %1429 = vdwg.mxu0
  %vm1430 = vcmp.gt.f32.partialorder %v1108, 0.0
  %vm1431 = vcmp.gt.f32.partialorder %v1109, 0.0
  %v1432 = vsel %vm1430, 1, 0
  %v1433 = vsel %vm1431, 1, 0
  %1434 = vset.pattern.permute.xlu0 0
  %1435 = vperm.xlu0 %1434, %v1432
  %v1436 = vpop.permute.xlu0 %1435
  %1437 = vset.pattern.permute.xlu0 0
  %1438 = vperm.xlu0 %1437, %v1433
  %v1439 = vpop.permute.xlu0 %1438
  %vm1440 = vcmp.eq.s32.totalorder %v1436, 1
  %vm1441 = vcmp.eq.s32.totalorder %v1439, 1
  %v1442 = vsel %vm1440, %v1425, %v1095
  %v1443 = vsel %vm1441, %v1428, %v1096
  %vm1444 = vcmask 523264
  %1445 = vst.msk [vmem:[%s8] sm:$0xff] %vm1444, %v1442
  %1446 = vst.msk [vmem:[%s8 + $0x8] sm:$0xff] %vm1444, %v1443
  // Predicated region
  $region34: #{tree_lstm_forest.1} parent=0 // pred_check
    _
  $region35: #{tree_lstm_forest.1} parent=0 // pred_check_branch
    %1448 = sbr.rel (0) target = $region37
  $region36: #{tree_lstm_forest.1} parent=0 // pred_region
    _
  $region37: #{tree_lstm_forest.1} parent=0 // pred_fallthru
    _
  // Predicated region
  $region38: #{tree_lstm_forest.1} parent=0 // pred_check
    _
  $region39: #{tree_lstm_forest.1} parent=0 // pred_check_branch
    %1450 = sbr.rel (0) target = $region41
  $region40: #{tree_lstm_forest.1} parent=0 // pred_region
    _
  $region41: #{tree_lstm_forest.1} parent=0 // pred_fallthru
    _

</llo_original>
